<compile_context>
chip_gen: v6e
topology: v6e:2x2x1
jax: 0.10.0
libtpu: 0.0.40
codegen_flags: <defaults>
</compile_context>

<pallas_src>
import functools

import jax
import jax.numpy as jnp
from jax.experimental import pallas as pl
from jax.experimental.pallas import tpu as pltpu


def _round_up(a, b):
    return (a + b - 1) // b * b


def _compiler_params(block_bytes, n_grid_axes=1):
    # Per-kernel VMEM budget: ~2x (double-buffered) block bytes + headroom,
    # clamped so it stays under v7x's 64 MiB physical VMEM.
    limit = int(min(max(2 * block_bytes + (8 << 20), 16 << 20), 48 << 20))
    return pltpu.CompilerParams(
        dimension_semantics=("parallel",) * n_grid_axes,
        vmem_limit_bytes=limit,
    )


# ----------------------------------------------------------------------------
# Kernel 1: fused layer1 (k=3, s=1, Cin=1, VPU) + ReLU + layer2 (k=3, s=2, MXU)
# ----------------------------------------------------------------------------
def _fused12_kernel(xp_ref, w1_ref, b1_ref, w2_ref, b2_ref, o_ref):
    """xp_ref: (1, L/2, 2) f32   raw signal, row l = (x[2l], x[2l+1])
    w1_ref: (3, d0)      f32     conv1 taps [w0; w1; w2]
    b1_ref: (1, d0)      f32
    w2_ref: (3*d0, d1)   bf16    conv2 stacked taps [W0; W1; W2]
    b2_ref: (1, d1)      f32
    o_ref:  (1, L/2, d1) bf16
    """
    d0 = w1_ref.shape[1]
    xp = xp_ref[0].astype(jnp.float32)
    x_even, x_odd = xp[:, 0:1], xp[:, 1:2]                     # x[2l], x[2l+1]
    z1 = jnp.zeros((1, 1), jnp.float32)
    x_odd_prev = jnp.concatenate([z1, x_odd[:-1]], axis=0)     # x[2l-1] (left pad)
    x_even_next = jnp.concatenate([x_even[1:], z1], axis=0)    # x[2l+2] (right pad)
    w10, w11, w12 = w1_ref[0:1, :], w1_ref[1:2, :], w1_ref[2:3, :]
    b1 = b1_ref[...]
    # conv1 as VPU broadcast mul-adds, split into even/odd output rows so the
    # stride-2 conv2 below needs no strided slicing or relayout.
    h_even = jnp.maximum(x_odd_prev * w10 + x_even * w11 + x_odd * w12 + b1, 0.0)
    h_odd = jnp.maximum(x_even * w10 + x_odd * w11 + x_even_next * w12 + b1, 0.0)
    # conv2: out[l] = h1[2l-1] @ W0 + h1[2l] @ W1 + h1[2l+1] @ W2  (one deep dot)
    h_odd_prev = jnp.concatenate(
        [jnp.zeros((1, d0), jnp.float32), h_odd[:-1]], axis=0)
    op = jnp.concatenate([h_odd_prev, h_even, h_odd], axis=-1).astype(jnp.bfloat16)
    y = jnp.dot(op, w2_ref[...], preferred_element_type=jnp.float32) + b2_ref[...]
    o_ref[0] = jnp.maximum(y, 0.0).astype(o_ref.dtype)


def fused_conv12(x_pairs, w1, b1, w2, b2):
    """x_pairs: (N, L/2, 2) f32 -> (N, L/2, d1) bf16 (layers 1+2 of the encoder)."""
    N, L2, _ = x_pairs.shape
    d0, d1 = w1.shape[1], w2.shape[1]
    blk = (L2 * 2 * 4 + 3 * d0 * 4 + d0 * 4 + 3 * d0 * d1 * 2 + d1 * 4
           + L2 * d1 * 2 + 3 * L2 * d0 * 4)
    return pl.pallas_call(
        _fused12_kernel,
        out_shape=jax.ShapeDtypeStruct((N, L2, d1), jnp.bfloat16),
        grid=(N,),
        in_specs=[
            pl.BlockSpec((1, L2, 2), lambda n: (n, 0, 0)),
            pl.BlockSpec((3, d0), lambda n: (0, 0)),
            pl.BlockSpec((1, d0), lambda n: (0, 0)),
            pl.BlockSpec((3 * d0, d1), lambda n: (0, 0)),
            pl.BlockSpec((1, d1), lambda n: (0, 0)),
        ],
        out_specs=pl.BlockSpec((1, L2, d1), lambda n: (n, 0, 0)),
        compiler_params=_compiler_params(blk),
    )(x_pairs, w1, b1.reshape(1, -1).astype(jnp.float32),
      w2, b2.reshape(1, -1).astype(jnp.float32))


# ----------------------------------------------------------------------------
# Kernel 2: Conv1d(k=3, pad=1, stride=2) + bias + ReLU as ONE deep matmul
# ----------------------------------------------------------------------------
def _conv_s2_kernel(xr_ref, w_ref, b_ref, o_ref):
    """xr_ref: (1, Lout, 2*Cin) bf16   row l = [h[2l] | h[2l+1]] (pair layout)
    w_ref : (3*Cin, Cout)     bf16     stacked taps [W0; W1; W2]
    b_ref : (1, Cout)         f32
    o_ref : (1, Lout, Cout)   bf16
    """
    cin = w_ref.shape[0] // 3
    xr = xr_ref[0]
    prev_odd = jnp.concatenate(
        [jnp.zeros((1, cin), xr.dtype), xr[:-1, cin:]], axis=0)      # h[2l-1]
    op = jnp.concatenate([prev_odd, xr], axis=-1)                    # (Lout, 3*Cin)
    y = jnp.dot(op, w_ref[...], preferred_element_type=jnp.float32) + b_ref[...]
    o_ref[0] = jnp.maximum(y, 0.0).astype(o_ref.dtype)


def conv_s2(h, w_stk, b):
    """h: (N, Lin, Cin) bf16 -> (N, Lin//2, Cout) bf16."""
    N, Lin, Cin = h.shape
    Cout = w_stk.shape[1]
    assert Lin % 2 == 0, "stride-2 conv expects even length"
    Lout = Lin // 2
    xr = h.reshape(N, Lout, 2 * Cin)   # row-major pair reshape (no padding pass)
    blk = (Lout * 2 * Cin * 2 + 3 * Cin * Cout * 2 + Cout * 4
           + Lout * Cout * 2 + Lout * 3 * Cin * 2)
    return pl.pallas_call(
        _conv_s2_kernel,
        out_shape=jax.ShapeDtypeStruct((N, Lout, Cout), jnp.bfloat16),
        grid=(N,),
        in_specs=[
            pl.BlockSpec((1, Lout, 2 * Cin), lambda n: (n, 0, 0)),
            pl.BlockSpec((3 * Cin, Cout), lambda n: (0, 0)),
            pl.BlockSpec((1, Cout), lambda n: (0, 0)),
        ],
        out_specs=pl.BlockSpec((1, Lout, Cout), lambda n: (n, 0, 0)),
        compiler_params=_compiler_params(blk),
    )(xr, w_stk, b.reshape(1, -1).astype(jnp.float32))


# ----------------------------------------------------------------------------
# Kernel 3: fused detector + descriptor 1x1-conv heads (lane-padded matmul)
# ----------------------------------------------------------------------------
def _head_kernel(x_ref, w_ref, b_ref, o_ref, *, sig_start):
    y = jnp.dot(x_ref[...], w_ref[...], preferred_element_type=jnp.float32)
    y = y + b_ref[...]
    # Descriptor slab raw; sigmoid only on the 128-aligned detector slab
    # (padded zero columns receive sigmoid(0)=0.5 but are sliced away outside).
    o_ref[:, :sig_start] = y[:, :sig_start].astype(o_ref.dtype)
    o_ref[:, sig_start:] = jax.nn.sigmoid(y[:, sig_start:]).astype(o_ref.dtype)


def fused_heads(feats, w_head, b_head, *, sig_start, tm=512):
    """feats: (M, K) bf16; w_head: (K, Np) bf16; b_head: (Np,) f32 -> (M, Np) f32."""
    M, K = feats.shape
    Np = w_head.shape[1]
    m_pad = _round_up(M, 8)
    tm = min(tm, m_pad)
    m_pad = _round_up(m_pad, tm)
    if m_pad != M:
        feats = jnp.pad(feats, ((0, m_pad - M), (0, 0)))
    b2 = b_head.reshape(1, Np).astype(jnp.float32)
    blk = tm * K * 2 + K * Np * 2 + Np * 4 + tm * Np * 4
    y = pl.pallas_call(
        functools.partial(_head_kernel, sig_start=sig_start),
        out_shape=jax.ShapeDtypeStruct((m_pad, Np), jnp.float32),
        grid=(m_pad // tm,),
        in_specs=[
            pl.BlockSpec((tm, K), lambda i: (i, 0)),
            pl.BlockSpec((K, Np), lambda i: (0, 0)),
            pl.BlockSpec((1, Np), lambda i: (0, 0)),
        ],
        out_specs=pl.BlockSpec((tm, Np), lambda i: (i, 0)),
        compiler_params=_compiler_params(blk),
    )(feats, w_head, b2)
    return y[:M]


# ----------------------------------------------------------------------------
# Kernel 4: x8 linear upsample (align_corners=False), phase-unrolled,
#           lane-dense stores; the channel-first transpose happens in XLA.
# ----------------------------------------------------------------------------
def _upsample8_kernel(x_ref, o_ref):
    """x_ref: (1, Lc, D) bf16 ;  o_ref: (1, 8, Lc, D) f32,  o[0,r,l] = out[8l+r]."""
    x = x_ref[0].astype(jnp.float32)
    x_prev = jnp.concatenate([x[:1], x[:-1]], axis=0)    # x[l-1], clamped left
    x_next = jnp.concatenate([x[1:], x[-1:]], axis=0)    # x[l+1], clamped right
    for r in range(8):
        if r < 4:   # out[8l+r] = (1-t)*x[l-1] + t*x[l],  t = (r+4.5)/8
            t = (r + 4.5) / 8.0
            y_r = (1.0 - t) * x_prev + t * x
        else:       # out[8l+r] = (1-t)*x[l]   + t*x[l+1], t = (r-3.5)/8
            t = (r - 3.5) / 8.0
            y_r = (1.0 - t) * x + t * x_next
        o_ref[0, r, :, :] = y_r.astype(o_ref.dtype)


def upsample8_phases(xd):
    """xd: (N, Lc, D) bf16 -> (N, 8, Lc, D) f32 (phase-major layout)."""
    N, Lc, D = xd.shape
    blk = Lc * D * 2 + 8 * Lc * D * 4
    return pl.pallas_call(
        _upsample8_kernel,
        out_shape=jax.ShapeDtypeStruct((N, 8, Lc, D), jnp.float32),
        grid=(N,),
        in_specs=[pl.BlockSpec((1, Lc, D), lambda n: (n, 0, 0))],
        out_specs=pl.BlockSpec((1, 8, Lc, D), lambda n: (n, 0, 0, 0)),
        compiler_params=_compiler_params(blk),
    )(xd)


# ----------------------------------------------------------------------------
# Parameters and forward pass
# ----------------------------------------------------------------------------
def flatten_conv3_weight(w, dtype=jnp.bfloat16):
    """PyTorch (Cout, Cin, 3) -> stacked-tap (3*Cin, Cout): rows [W0; W1; W2]."""
    return jnp.transpose(w, (2, 1, 0)).reshape(-1, w.shape[0]).astype(dtype)


def init_params(key, input_channels=1, encoder_dims=(64, 64, 128, 128),
                descriptor_dim=256, cell_size=8):
    assert input_channels == 1
    keys = jax.random.split(key, 12)
    d0, d1, d2, d3 = encoder_dims

    def conv3(k, cin, cout, dtype=jnp.bfloat16):
        return flatten_conv3_weight(
            jax.random.normal(k, (cout, cin, 3), jnp.float32) * 0.1, dtype)

    w_det = jax.random.normal(keys[8], (d3, cell_size + 1), jnp.float32) * 0.1
    b_det = jax.random.normal(keys[9], (cell_size + 1,), jnp.float32) * 0.01
    w_desc = jax.random.normal(keys[10], (d3, descriptor_dim), jnp.float32) * 0.1
    b_desc = jax.random.normal(keys[11], (descriptor_dim,), jnp.float32) * 0.01

    # Fused head: [desc | det | zero-pad] -> 384 columns (3 x 128 lanes).
    n_real = descriptor_dim + cell_size + 1
    n_pad = _round_up(n_real, 128)
    w_head = jnp.concatenate(
        [w_desc, w_det, jnp.zeros((d3, n_pad - n_real), jnp.float32)], axis=1)
    b_head = jnp.concatenate(
        [b_desc, b_det, jnp.zeros((n_pad - n_real,), jnp.float32)], axis=0)

    return {
        "w1": conv3(keys[0], input_channels, d0, jnp.float32),   # Cin=1 VPU path
        "b1": jax.random.normal(keys[1], (d0,), jnp.float32) * 0.01,
        "w2": conv3(keys[2], d0, d1),
        "b2": jax.random.normal(keys[3], (d1,), jnp.float32) * 0.01,
        "w3": conv3(keys[4], d1, d2),
        "b3": jax.random.normal(keys[5], (d2,), jnp.float32) * 0.01,
        "w4": conv3(keys[6], d2, d3),
        "b4": jax.random.normal(keys[7], (d3,), jnp.float32) * 0.01,
        "w_head": w_head.astype(jnp.bfloat16),
        "b_head": b_head.astype(jnp.float32),
    }


def timepoint_forward(x, params, descriptor_dim=256, cell_size=8):
    """x: (N, 1, L) NCL input.  Returns (detection_proba (N, 1, L),
    descriptors (N, descriptor_dim, L)) with PyTorch shapes/semantics."""
    N, C, L = x.shape
    assert C == 1 and L % 8 == 0
    x_pairs = x.reshape(N, L // 2, 2).astype(jnp.float32)

    # Encoder (downsample by 8); layers 1+2 fused into one kernel.
    h2 = fused_conv12(x_pairs, params["w1"], params["b1"],
                      params["w2"], params["b2"])               # (N, L/2, d1)
    h3 = conv_s2(h2, params["w3"], params["b3"])                # (N, L/4, d2)
    h4 = conv_s2(h3, params["w4"], params["b4"])                # (N, L/8, d3)
    Nb, Lc, Cf = h4.shape

    # Fused 1x1-conv detector + descriptor heads (one lane-dense matmul).
    y = fused_heads(h4.reshape(Nb * Lc, Cf), params["w_head"], params["b_head"],
                    sig_start=descriptor_dim)

    # Detector: sigmoid already applied in-kernel; drop dustbin, unfold cells.
    det = y[:, descriptor_dim:descriptor_dim + cell_size]
    det = det.reshape(Nb, 1, Lc * cell_size)[:, :, :L]

    # Descriptor: phase-major x8 linear upsample; channel-first transpose in XLA.
    desc = y[:, :descriptor_dim].reshape(Nb, Lc, descriptor_dim)
    desc = upsample8_phases(desc.astype(jnp.bfloat16))           # (N, 8, Lc, D)
    desc = jnp.transpose(desc, (0, 3, 2, 1)).reshape(Nb, descriptor_dim, Lc * 8)
    desc = desc[:, :, :L]
    return det, desc


# ----------------------------------------------------------------------------
if __name__ == "__main__":
    N, C, L = 2, 1, 64          # L divisible by 8 -> Lc = 8
    descriptor_dim, cell_size = 256, 8

    key = jax.random.PRNGKey(0)
    kx, kp = jax.random.split(key)
    x = jax.random.normal(kx, (N, C, L), jnp.float32)

    params = init_params(kp, input_channels=C,
                         encoder_dims=(64, 64, 128, 128),
                         descriptor_dim=descriptor_dim, cell_size=cell_size)

    fwd = jax.jit(functools.partial(timepoint_forward,
                                    descriptor_dim=descriptor_dim,
                                    cell_size=cell_size))
    det, desc = jax.block_until_ready(fwd(x, params))

    assert det.shape == (N, 1, L), det.shape
    assert desc.shape == (N, descriptor_dim, L), desc.shape
    assert bool(jnp.all(jnp.isfinite(det))) and bool(jnp.all(jnp.isfinite(desc)))
    print("KERNEL_OK")
</pallas_src>

<mosaic_0001>
module attributes {stable_mosaic.version = 11 : i64} {
  func.func @_conv_s2_kernel(%arg0: i32, %arg1: memref<1x8x256xbf16, #tpu.memory_space<vmem>>, %arg2: memref<384x128xbf16, #tpu.memory_space<vmem>>, %arg3: memref<1x128xf32, #tpu.memory_space<vmem>>, %arg4: memref<1x8x128xbf16, #tpu.memory_space<vmem>>) attributes {dimension_semantics = [#tpu.dimension_semantics<parallel>], iteration_bounds = array<i64: 2>, scalar_prefetch = 0 : i64, scratch_operands = 0 : i64, tpu.core_type = #tpu.core_type<tc>, window_params = [{transform_indices = @transform_0, window_bounds = array<i64: 1, 8, 256>}, {pipeline_mode = #tpu.pipeline_mode<synchronous>, transform_indices = @transform_1, window_bounds = array<i64: 384, 128>}, {pipeline_mode = #tpu.pipeline_mode<synchronous>, transform_indices = @transform_2, window_bounds = array<i64: 1, 128>}, {transform_indices = @transform_3, window_bounds = array<i64: 1, 8, 128>}]} {
    %c0 = arith.constant 0 : index
    %c0_0 = arith.constant 0 : index
    %c0_1 = arith.constant 0 : index
    %0 = vector.load %arg1[%c0, %c0_0, %c0_1] : memref<1x8x256xbf16, #tpu.memory_space<vmem>>, vector<1x8x256xbf16>
    %1 = vector.shape_cast %0 : vector<1x8x256xbf16> to vector<8x256xbf16>
    %cst = arith.constant 0.000000e+00 : bf16
    %2 = vector.broadcast %cst : bf16 to vector<1x128xbf16>
    %3 = vector.extract_strided_slice %1 {offsets = [0, 128], sizes = [7, 128], strides = [1, 1]} : vector<8x256xbf16> to vector<7x128xbf16>
    %4 = tpu.concatenate %2, %3 in 0 : vector<1x128xbf16>, vector<7x128xbf16> -> vector<8x128xbf16>
    %5 = tpu.concatenate %4, %1 in 1 : vector<8x128xbf16>, vector<8x256xbf16> -> vector<8x384xbf16>
    %c0_2 = arith.constant 0 : index
    %c0_3 = arith.constant 0 : index
    %6 = vector.load %arg2[%c0_2, %c0_3] : memref<384x128xbf16, #tpu.memory_space<vmem>>, vector<384x128xbf16>
    %cst_4 = arith.constant dense<0.000000e+00> : vector<8x128xf32>
    %7 = tpu.matmul %5, %6, %cst_4 {dimension_numbers = #tpu.dot_dimension_numbers<[1], [0], [0], [1], [0, 0, 1, 1], [], []>} : vector<8x384xbf16>, vector<384x128xbf16>, vector<8x128xf32> -> vector<8x128xf32>
    %c0_5 = arith.constant 0 : index
    %c0_6 = arith.constant 0 : index
    %8 = vector.load %arg3[%c0_5, %c0_6] : memref<1x128xf32, #tpu.memory_space<vmem>>, vector<1x128xf32>
    %9 = vector.broadcast %8 : vector<1x128xf32> to vector<8x128xf32>
    %10 = arith.addf %7, %9 : vector<8x128xf32>
    %cst_7 = arith.constant 0.000000e+00 : f32
    %11 = vector.broadcast %cst_7 : f32 to vector<8x128xf32>
    %12 = arith.maximumf %10, %11 : vector<8x128xf32>
    %13 = arith.truncf %12 : vector<8x128xf32> to vector<8x128xbf16>
    %c0_8 = arith.constant 0 : index
    %c0_9 = arith.constant 0 : index
    %c0_10 = arith.constant 0 : index
    %14 = vector.load %arg4[%c0_8, %c0_9, %c0_10] : memref<1x8x128xbf16, #tpu.memory_space<vmem>>, vector<1x8x128xbf16>
    %15 = vector.shape_cast %14 : vector<1x8x128xbf16> to vector<8x128xbf16>
    %16 = vector.shape_cast %13 : vector<8x128xbf16> to vector<1x8x128xbf16>
    tpu.vector_store %arg4[%c0_8, %c0_9, %c0_10], %16 {strides = array<i32>} : memref<1x8x128xbf16, #tpu.memory_space<vmem>>, vector<1x8x128xbf16>,
    return
  }
  func.func @transform_0(%arg0: i32) -> (i32, i32, i32) {
    %c0_i32 = arith.constant 0 : i32
    %c0_i32_0 = arith.constant 0 : i32
    %c0_i32_1 = arith.constant 0 : i32
    return %arg0, %c0_i32, %c0_i32_0 : i32, i32, i32
  }
  func.func @transform_1(%arg0: i32) -> (i32, i32) {
    %c0_i32 = arith.constant 0 : i32
    %c0_i32_0 = arith.constant 0 : i32
    %c0_i32_1 = arith.constant 0 : i32
    return %c0_i32, %c0_i32_0 : i32, i32
  }
  func.func @transform_2(%arg0: i32) -> (i32, i32) {
    %c0_i32 = arith.constant 0 : i32
    %c0_i32_0 = arith.constant 0 : i32
    %c0_i32_1 = arith.constant 0 : i32
    return %c0_i32, %c0_i32_0 : i32, i32
  }
  func.func @transform_3(%arg0: i32) -> (i32, i32, i32) {
    %c0_i32 = arith.constant 0 : i32
    %c0_i32_0 = arith.constant 0 : i32
    %c0_i32_1 = arith.constant 0 : i32
    return %arg0, %c0_i32, %c0_i32_0 : i32, i32, i32
  }
}

module attributes {stable_mosaic.version = 11 : i64} {
  func.func @_fused12_kernel(%arg0: i32, %arg1: memref<1x32x2xf32, #tpu.memory_space<vmem>>, %arg2: memref<3x64xf32, #tpu.memory_space<vmem>>, %arg3: memref<1x64xf32, #tpu.memory_space<vmem>>, %arg4: memref<192x64xbf16, #tpu.memory_space<vmem>>, %arg5: memref<1x64xf32, #tpu.memory_space<vmem>>, %arg6: memref<1x32x64xbf16, #tpu.memory_space<vmem>>) attributes {dimension_semantics = [#tpu.dimension_semantics<parallel>], iteration_bounds = array<i64: 2>, scalar_prefetch = 0 : i64, scratch_operands = 0 : i64, tpu.core_type = #tpu.core_type<tc>, window_params = [{transform_indices = @transform_0, window_bounds = array<i64: 1, 32, 2>}, {pipeline_mode = #tpu.pipeline_mode<synchronous>, transform_indices = @transform_1, window_bounds = array<i64: 3, 64>}, {pipeline_mode = #tpu.pipeline_mode<synchronous>, transform_indices = @transform_2, window_bounds = array<i64: 1, 64>}, {pipeline_mode = #tpu.pipeline_mode<synchronous>, transform_indices = @transform_3, window_bounds = array<i64: 192, 64>}, {pipeline_mode = #tpu.pipeline_mode<synchronous>, transform_indices = @transform_4, window_bounds = array<i64: 1, 64>}, {transform_indices = @transform_5, window_bounds = array<i64: 1, 32, 64>}]} {
    %c0 = arith.constant 0 : index
    %c0_0 = arith.constant 0 : index
    %c0_1 = arith.constant 0 : index
    %0 = vector.load %arg1[%c0, %c0_0, %c0_1] : memref<1x32x2xf32, #tpu.memory_space<vmem>>, vector<1x32x2xf32>
    %1 = vector.shape_cast %0 : vector<1x32x2xf32> to vector<32x2xf32>
    %2 = vector.extract_strided_slice %1 {offsets = [0, 0], sizes = [32, 1], strides = [1, 1]} : vector<32x2xf32> to vector<32x1xf32>
    %3 = vector.extract_strided_slice %1 {offsets = [0, 1], sizes = [32, 1], strides = [1, 1]} : vector<32x2xf32> to vector<32x1xf32>
    %cst = arith.constant 0.000000e+00 : f32
    %4 = vector.broadcast %cst : f32 to vector<1x1xf32>
    %5 = vector.extract_strided_slice %3 {offsets = [0, 0], sizes = [31, 1], strides = [1, 1]} : vector<32x1xf32> to vector<31x1xf32>
    %6 = tpu.concatenate %4, %5 in 0 : vector<1x1xf32>, vector<31x1xf32> -> vector<32x1xf32>
    %7 = vector.extract_strided_slice %2 {offsets = [1, 0], sizes = [31, 1], strides = [1, 1]} : vector<32x1xf32> to vector<31x1xf32>
    %8 = tpu.concatenate %7, %4 in 0 : vector<31x1xf32>, vector<1x1xf32> -> vector<32x1xf32>
    %c0_2 = arith.constant 0 : index
    %c0_3 = arith.constant 0 : index
    %9 = vector.load %arg2[%c0_2, %c0_3] : memref<3x64xf32, #tpu.memory_space<vmem>>, vector<1x64xf32>
    %c1 = arith.constant 1 : index
    %c0_4 = arith.constant 0 : index
    %10 = vector.load %arg2[%c1, %c0_4] : memref<3x64xf32, #tpu.memory_space<vmem>>, vector<1x64xf32>
    %c2 = arith.constant 2 : index
    %c0_5 = arith.constant 0 : index
    %11 = vector.load %arg2[%c2, %c0_5] : memref<3x64xf32, #tpu.memory_space<vmem>>, vector<1x64xf32>
    %c0_6 = arith.constant 0 : index
    %c0_7 = arith.constant 0 : index
    %12 = vector.load %arg3[%c0_6, %c0_7] : memref<1x64xf32, #tpu.memory_space<vmem>>, vector<1x64xf32>
    %13 = vector.broadcast %6 : vector<32x1xf32> to vector<32x64xf32>
    %14 = vector.broadcast %9 : vector<1x64xf32> to vector<32x64xf32>
    %15 = arith.mulf %13, %14 : vector<32x64xf32>
    %16 = vector.broadcast %2 : vector<32x1xf32> to vector<32x64xf32>
    %17 = vector.broadcast %10 : vector<1x64xf32> to vector<32x64xf32>
    %18 = arith.mulf %16, %17 : vector<32x64xf32>
    %19 = arith.addf %15, %18 : vector<32x64xf32>
    %20 = vector.broadcast %3 : vector<32x1xf32> to vector<32x64xf32>
    %21 = vector.broadcast %11 : vector<1x64xf32> to vector<32x64xf32>
    %22 = arith.mulf %20, %21 : vector<32x64xf32>
    %23 = arith.addf %19, %22 : vector<32x64xf32>
    %24 = vector.broadcast %12 : vector<1x64xf32> to vector<32x64xf32>
    %25 = arith.addf %23, %24 : vector<32x64xf32>
    %cst_8 = arith.constant 0.000000e+00 : f32
    %26 = vector.broadcast %cst_8 : f32 to vector<32x64xf32>
    %27 = arith.maximumf %25, %26 : vector<32x64xf32>
    %28 = vector.broadcast %2 : vector<32x1xf32> to vector<32x64xf32>
    %29 = vector.broadcast %9 : vector<1x64xf32> to vector<32x64xf32>
    %30 = arith.mulf %28, %29 : vector<32x64xf32>
    %31 = vector.broadcast %3 : vector<32x1xf32> to vector<32x64xf32>
    %32 = vector.broadcast %10 : vector<1x64xf32> to vector<32x64xf32>
    %33 = arith.mulf %31, %32 : vector<32x64xf32>
    %34 = arith.addf %30, %33 : vector<32x64xf32>
    %35 = vector.broadcast %8 : vector<32x1xf32> to vector<32x64xf32>
    %36 = vector.broadcast %11 : vector<1x64xf32> to vector<32x64xf32>
    %37 = arith.mulf %35, %36 : vector<32x64xf32>
    %38 = arith.addf %34, %37 : vector<32x64xf32>
    %39 = vector.broadcast %12 : vector<1x64xf32> to vector<32x64xf32>
    %40 = arith.addf %38, %39 : vector<32x64xf32>
    %cst_9 = arith.constant 0.000000e+00 : f32
    %41 = vector.broadcast %cst_9 : f32 to vector<32x64xf32>
    %42 = arith.maximumf %40, %41 : vector<32x64xf32>
    %cst_10 = arith.constant 0.000000e+00 : f32
    %43 = vector.broadcast %cst_10 : f32 to vector<1x64xf32>
    %44 = vector.extract_strided_slice %42 {offsets = [0, 0], sizes = [31, 64], strides = [1, 1]} : vector<32x64xf32> to vector<31x64xf32>
    %45 = tpu.concatenate %43, %44 in 0 : vector<1x64xf32>, vector<31x64xf32> -> vector<32x64xf32>
    %46 = tpu.concatenate %45, %27, %42 in 1 : vector<32x64xf32>, vector<32x64xf32>, vector<32x64xf32> -> vector<32x192xf32>
    %47 = arith.truncf %46 : vector<32x192xf32> to vector<32x192xbf16>
    %c0_11 = arith.constant 0 : index
    %c0_12 = arith.constant 0 : index
    %48 = vector.load %arg4[%c0_11, %c0_12] : memref<192x64xbf16, #tpu.memory_space<vmem>>, vector<192x64xbf16>
    %cst_13 = arith.constant dense<0.000000e+00> : vector<32x64xf32>
    %49 = tpu.matmul %47, %48, %cst_13 {dimension_numbers = #tpu.dot_dimension_numbers<[1], [0], [0], [1], [0, 0, 1, 1], [], []>} : vector<32x192xbf16>, vector<192x64xbf16>, vector<32x64xf32> -> vector<32x64xf32>
    %c0_14 = arith.constant 0 : index
    %c0_15 = arith.constant 0 : index
    %50 = vector.load %arg5[%c0_14, %c0_15] : memref<1x64xf32, #tpu.memory_space<vmem>>, vector<1x64xf32>
    %51 = vector.broadcast %50 : vector<1x64xf32> to vector<32x64xf32>
    %52 = arith.addf %49, %51 : vector<32x64xf32>
    %cst_16 = arith.constant 0.000000e+00 : f32
    %53 = vector.broadcast %cst_16 : f32 to vector<32x64xf32>
    %54 = arith.maximumf %52, %53 : vector<32x64xf32>
    %55 = arith.truncf %54 : vector<32x64xf32> to vector<32x64xbf16>
    %c0_17 = arith.constant 0 : index
    %c0_18 = arith.constant 0 : index
    %c0_19 = arith.constant 0 : index
    %56 = vector.load %arg6[%c0_17, %c0_18, %c0_19] : memref<1x32x64xbf16, #tpu.memory_space<vmem>>, vector<1x32x64xbf16>
    %57 = vector.shape_cast %56 : vector<1x32x64xbf16> to vector<32x64xbf16>
    %58 = vector.shape_cast %55 : vector<32x64xbf16> to vector<1x32x64xbf16>
    tpu.vector_store %arg6[%c0_17, %c0_18, %c0_19], %58 {strides = array<i32>} : memref<1x32x64xbf16, #tpu.memory_space<vmem>>, vector<1x32x64xbf16>,
    return
  }
  func.func @transform_0(%arg0: i32) -> (i32, i32, i32) {
    %c0_i32 = arith.constant 0 : i32
    %c0_i32_0 = arith.constant 0 : i32
    %c0_i32_1 = arith.constant 0 : i32
    return %arg0, %c0_i32, %c0_i32_0 : i32, i32, i32
  }
  func.func @transform_1(%arg0: i32) -> (i32, i32) {
    %c0_i32 = arith.constant 0 : i32
    %c0_i32_0 = arith.constant 0 : i32
    %c0_i32_1 = arith.constant 0 : i32
    return %c0_i32, %c0_i32_0 : i32, i32
  }
  func.func @transform_2(%arg0: i32) -> (i32, i32) {
    %c0_i32 = arith.constant 0 : i32
    %c0_i32_0 = arith.constant 0 : i32
    %c0_i32_1 = arith.constant 0 : i32
    return %c0_i32, %c0_i32_0 : i32, i32
  }
  func.func @transform_3(%arg0: i32) -> (i32, i32) {
    %c0_i32 = arith.constant 0 : i32
    %c0_i32_0 = arith.constant 0 : i32
    %c0_i32_1 = arith.constant 0 : i32
    return %c0_i32, %c0_i32_0 : i32, i32
  }
  func.func @transform_4(%arg0: i32) -> (i32, i32) {
    %c0_i32 = arith.constant 0 : i32
    %c0_i32_0 = arith.constant 0 : i32
    %c0_i32_1 = arith.constant 0 : i32
    return %c0_i32, %c0_i32_0 : i32, i32
  }
  func.func @transform_5(%arg0: i32) -> (i32, i32, i32) {
    %c0_i32 = arith.constant 0 : i32
    %c0_i32_0 = arith.constant 0 : i32
    %c0_i32_1 = arith.constant 0 : i32
    return %arg0, %c0_i32, %c0_i32_0 : i32, i32, i32
  }
}

module attributes {stable_mosaic.version = 11 : i64} {
  func.func @_conv_s2_kernel(%arg0: i32, %arg1: memref<1x16x128xbf16, #tpu.memory_space<vmem>>, %arg2: memref<192x128xbf16, #tpu.memory_space<vmem>>, %arg3: memref<1x128xf32, #tpu.memory_space<vmem>>, %arg4: memref<1x16x128xbf16, #tpu.memory_space<vmem>>) attributes {dimension_semantics = [#tpu.dimension_semantics<parallel>], iteration_bounds = array<i64: 2>, scalar_prefetch = 0 : i64, scratch_operands = 0 : i64, tpu.core_type = #tpu.core_type<tc>, window_params = [{transform_indices = @transform_0, window_bounds = array<i64: 1, 16, 128>}, {pipeline_mode = #tpu.pipeline_mode<synchronous>, transform_indices = @transform_1, window_bounds = array<i64: 192, 128>}, {pipeline_mode = #tpu.pipeline_mode<synchronous>, transform_indices = @transform_2, window_bounds = array<i64: 1, 128>}, {transform_indices = @transform_3, window_bounds = array<i64: 1, 16, 128>}]} {
    %c0 = arith.constant 0 : index
    %c0_0 = arith.constant 0 : index
    %c0_1 = arith.constant 0 : index
    %0 = vector.load %arg1[%c0, %c0_0, %c0_1] : memref<1x16x128xbf16, #tpu.memory_space<vmem>>, vector<1x16x128xbf16>
    %1 = vector.shape_cast %0 : vector<1x16x128xbf16> to vector<16x128xbf16>
    %cst = arith.constant 0.000000e+00 : bf16
    %2 = vector.broadcast %cst : bf16 to vector<1x64xbf16>
    %3 = vector.extract_strided_slice %1 {offsets = [0, 64], sizes = [15, 64], strides = [1, 1]} : vector<16x128xbf16> to vector<15x64xbf16>
    %4 = tpu.concatenate %2, %3 in 0 : vector<1x64xbf16>, vector<15x64xbf16> -> vector<16x64xbf16>
    %5 = tpu.concatenate %4, %1 in 1 : vector<16x64xbf16>, vector<16x128xbf16> -> vector<16x192xbf16>
    %c0_2 = arith.constant 0 : index
    %c0_3 = arith.constant 0 : index
    %6 = vector.load %arg2[%c0_2, %c0_3] : memref<192x128xbf16, #tpu.memory_space<vmem>>, vector<192x128xbf16>
    %cst_4 = arith.constant dense<0.000000e+00> : vector<16x128xf32>
    %7 = tpu.matmul %5, %6, %cst_4 {dimension_numbers = #tpu.dot_dimension_numbers<[1], [0], [0], [1], [0, 0, 1, 1], [], []>} : vector<16x192xbf16>, vector<192x128xbf16>, vector<16x128xf32> -> vector<16x128xf32>
    %c0_5 = arith.constant 0 : index
    %c0_6 = arith.constant 0 : index
    %8 = vector.load %arg3[%c0_5, %c0_6] : memref<1x128xf32, #tpu.memory_space<vmem>>, vector<1x128xf32>
    %9 = vector.broadcast %8 : vector<1x128xf32> to vector<16x128xf32>
    %10 = arith.addf %7, %9 : vector<16x128xf32>
    %cst_7 = arith.constant 0.000000e+00 : f32
    %11 = vector.broadcast %cst_7 : f32 to vector<16x128xf32>
    %12 = arith.maximumf %10, %11 : vector<16x128xf32>
    %13 = arith.truncf %12 : vector<16x128xf32> to vector<16x128xbf16>
    %c0_8 = arith.constant 0 : index
    %c0_9 = arith.constant 0 : index
    %c0_10 = arith.constant 0 : index
    %14 = vector.load %arg4[%c0_8, %c0_9, %c0_10] : memref<1x16x128xbf16, #tpu.memory_space<vmem>>, vector<1x16x128xbf16>
    %15 = vector.shape_cast %14 : vector<1x16x128xbf16> to vector<16x128xbf16>
    %16 = vector.shape_cast %13 : vector<16x128xbf16> to vector<1x16x128xbf16>
    tpu.vector_store %arg4[%c0_8, %c0_9, %c0_10], %16 {strides = array<i32>} : memref<1x16x128xbf16, #tpu.memory_space<vmem>>, vector<1x16x128xbf16>,
    return
  }
  func.func @transform_0(%arg0: i32) -> (i32, i32, i32) {
    %c0_i32 = arith.constant 0 : i32
    %c0_i32_0 = arith.constant 0 : i32
    %c0_i32_1 = arith.constant 0 : i32
    return %arg0, %c0_i32, %c0_i32_0 : i32, i32, i32
  }
  func.func @transform_1(%arg0: i32) -> (i32, i32) {
    %c0_i32 = arith.constant 0 : i32
    %c0_i32_0 = arith.constant 0 : i32
    %c0_i32_1 = arith.constant 0 : i32
    return %c0_i32, %c0_i32_0 : i32, i32
  }
  func.func @transform_2(%arg0: i32) -> (i32, i32) {
    %c0_i32 = arith.constant 0 : i32
    %c0_i32_0 = arith.constant 0 : i32
    %c0_i32_1 = arith.constant 0 : i32
    return %c0_i32, %c0_i32_0 : i32, i32
  }
  func.func @transform_3(%arg0: i32) -> (i32, i32, i32) {
    %c0_i32 = arith.constant 0 : i32
    %c0_i32_0 = arith.constant 0 : i32
    %c0_i32_1 = arith.constant 0 : i32
    return %arg0, %c0_i32, %c0_i32_0 : i32, i32, i32
  }
}

module attributes {stable_mosaic.version = 11 : i64} {
  func.func @_head_kernel(%arg0: i32, %arg1: memref<16x128xbf16, #tpu.memory_space<vmem>>, %arg2: memref<128x384xbf16, #tpu.memory_space<vmem>>, %arg3: memref<1x384xf32, #tpu.memory_space<vmem>>, %arg4: memref<16x384xf32, #tpu.memory_space<vmem>>) attributes {dimension_semantics = [#tpu.dimension_semantics<parallel>], iteration_bounds = array<i64: 1>, scalar_prefetch = 0 : i64, scratch_operands = 0 : i64, tpu.core_type = #tpu.core_type<tc>, window_params = [{transform_indices = @transform_0, window_bounds = array<i64: 16, 128>}, {pipeline_mode = #tpu.pipeline_mode<synchronous>, transform_indices = @transform_1, window_bounds = array<i64: 128, 384>}, {pipeline_mode = #tpu.pipeline_mode<synchronous>, transform_indices = @transform_2, window_bounds = array<i64: 1, 384>}, {transform_indices = @transform_3, window_bounds = array<i64: 16, 384>}]} {
    %c0 = arith.constant 0 : index
    %c0_0 = arith.constant 0 : index
    %0 = vector.load %arg1[%c0, %c0_0] : memref<16x128xbf16, #tpu.memory_space<vmem>>, vector<16x128xbf16>
    %c0_1 = arith.constant 0 : index
    %c0_2 = arith.constant 0 : index
    %1 = vector.load %arg2[%c0_1, %c0_2] : memref<128x384xbf16, #tpu.memory_space<vmem>>, vector<128x384xbf16>
    %cst = arith.constant dense<0.000000e+00> : vector<16x384xf32>
    %2 = tpu.matmul %0, %1, %cst {dimension_numbers = #tpu.dot_dimension_numbers<[1], [0], [0], [1], [0, 0, 1, 1], [], []>} : vector<16x128xbf16>, vector<128x384xbf16>, vector<16x384xf32> -> vector<16x384xf32>
    %c0_3 = arith.constant 0 : index
    %c0_4 = arith.constant 0 : index
    %3 = vector.load %arg3[%c0_3, %c0_4] : memref<1x384xf32, #tpu.memory_space<vmem>>, vector<1x384xf32>
    %4 = vector.broadcast %3 : vector<1x384xf32> to vector<16x384xf32>
    %5 = arith.addf %2, %4 : vector<16x384xf32>
    %6 = vector.extract_strided_slice %5 {offsets = [0, 0], sizes = [16, 256], strides = [1, 1]} : vector<16x384xf32> to vector<16x256xf32>
    %c0_5 = arith.constant 0 : index
    %c0_6 = arith.constant 0 : index
    %7 = vector.load %arg4[%c0_5, %c0_6] : memref<16x384xf32, #tpu.memory_space<vmem>>, vector<16x256xf32>
    tpu.vector_store %arg4[%c0_5, %c0_6], %6 {strides = array<i32>} : memref<16x384xf32, #tpu.memory_space<vmem>>, vector<16x256xf32>,
    %8 = vector.extract_strided_slice %5 {offsets = [0, 256], sizes = [16, 128], strides = [1, 1]} : vector<16x384xf32> to vector<16x128xf32>
    %9 = arith.negf %8 : vector<16x128xf32>
    %10 = math.exp %9 : vector<16x128xf32>
    %cst_7 = arith.constant 1.000000e+00 : f32
    %11 = vector.broadcast %cst_7 : f32 to vector<16x128xf32>
    %12 = arith.addf %11, %10 : vector<16x128xf32>
    %13 = arith.divf %11, %12 : vector<16x128xf32>
    %c0_8 = arith.constant 0 : index
    %c256 = arith.constant 256 : index
    %14 = vector.load %arg4[%c0_8, %c256] : memref<16x384xf32, #tpu.memory_space<vmem>>, vector<16x128xf32>
    tpu.vector_store %arg4[%c0_8, %c256], %13 {strides = array<i32>} : memref<16x384xf32, #tpu.memory_space<vmem>>, vector<16x128xf32>,
    return
  }
  func.func @transform_0(%arg0: i32) -> (i32, i32) {
    %c0_i32 = arith.constant 0 : i32
    %c0_i32_0 = arith.constant 0 : i32
    return %arg0, %c0_i32 : i32, i32
  }
  func.func @transform_1(%arg0: i32) -> (i32, i32) {
    %c0_i32 = arith.constant 0 : i32
    %c0_i32_0 = arith.constant 0 : i32
    %c0_i32_1 = arith.constant 0 : i32
    return %c0_i32, %c0_i32_0 : i32, i32
  }
  func.func @transform_2(%arg0: i32) -> (i32, i32) {
    %c0_i32 = arith.constant 0 : i32
    %c0_i32_0 = arith.constant 0 : i32
    %c0_i32_1 = arith.constant 0 : i32
    return %c0_i32, %c0_i32_0 : i32, i32
  }
  func.func @transform_3(%arg0: i32) -> (i32, i32) {
    %c0_i32 = arith.constant 0 : i32
    %c0_i32_0 = arith.constant 0 : i32
    return %arg0, %c0_i32 : i32, i32
  }
}

module attributes {stable_mosaic.version = 11 : i64} {
  func.func @_upsample8_kernel(%arg0: i32, %arg1: memref<1x8x256xbf16, #tpu.memory_space<vmem>>, %arg2: memref<1x8x8x256xf32, #tpu.memory_space<vmem>>) attributes {dimension_semantics = [#tpu.dimension_semantics<parallel>], iteration_bounds = array<i64: 2>, scalar_prefetch = 0 : i64, scratch_operands = 0 : i64, tpu.core_type = #tpu.core_type<tc>, window_params = [{transform_indices = @transform_0, window_bounds = array<i64: 1, 8, 256>}, {transform_indices = @transform_1, window_bounds = array<i64: 1, 8, 8, 256>}]} {
    %c0 = arith.constant 0 : index
    %c0_0 = arith.constant 0 : index
    %c0_1 = arith.constant 0 : index
    %0 = vector.load %arg1[%c0, %c0_0, %c0_1] : memref<1x8x256xbf16, #tpu.memory_space<vmem>>, vector<1x8x256xbf16>
    %1 = vector.shape_cast %0 : vector<1x8x256xbf16> to vector<8x256xbf16>
    %2 = arith.extf %1 : vector<8x256xbf16> to vector<8x256xf32>
    %3 = vector.extract_strided_slice %2 {offsets = [0, 0], sizes = [1, 256], strides = [1, 1]} : vector<8x256xf32> to vector<1x256xf32>
    %4 = vector.extract_strided_slice %2 {offsets = [0, 0], sizes = [7, 256], strides = [1, 1]} : vector<8x256xf32> to vector<7x256xf32>
    %5 = tpu.concatenate %3, %4 in 0 : vector<1x256xf32>, vector<7x256xf32> -> vector<8x256xf32>
    %6 = vector.extract_strided_slice %2 {offsets = [1, 0], sizes = [7, 256], strides = [1, 1]} : vector<8x256xf32> to vector<7x256xf32>
    %7 = vector.extract_strided_slice %2 {offsets = [7, 0], sizes = [1, 256], strides = [1, 1]} : vector<8x256xf32> to vector<1x256xf32>
    %8 = tpu.concatenate %6, %7 in 0 : vector<7x256xf32>, vector<1x256xf32> -> vector<8x256xf32>
    %cst = arith.constant 4.375000e-01 : f32
    %9 = vector.broadcast %cst : f32 to vector<8x256xf32>
    %10 = arith.mulf %9, %5 : vector<8x256xf32>
    %cst_2 = arith.constant 5.625000e-01 : f32
    %11 = vector.broadcast %cst_2 : f32 to vector<8x256xf32>
    %12 = arith.mulf %11, %2 : vector<8x256xf32>
    %13 = arith.addf %10, %12 : vector<8x256xf32>
    %c0_3 = arith.constant 0 : index
    %c0_4 = arith.constant 0 : index
    %c0_5 = arith.constant 0 : index
    %c0_6 = arith.constant 0 : index
    %14 = vector.load %arg2[%c0_3, %c0_4, %c0_5, %c0_6] : memref<1x8x8x256xf32, #tpu.memory_space<vmem>>, vector<1x1x8x256xf32>
    %15 = vector.shape_cast %14 : vector<1x1x8x256xf32> to vector<8x256xf32>
    %16 = vector.shape_cast %13 : vector<8x256xf32> to vector<1x1x8x256xf32>
    tpu.vector_store %arg2[%c0_3, %c0_4, %c0_5, %c0_6], %16 {strides = array<i32>} : memref<1x8x8x256xf32, #tpu.memory_space<vmem>>, vector<1x1x8x256xf32>,
    %cst_7 = arith.constant 3.125000e-01 : f32
    %17 = vector.broadcast %cst_7 : f32 to vector<8x256xf32>
    %18 = arith.mulf %17, %5 : vector<8x256xf32>
    %cst_8 = arith.constant 6.875000e-01 : f32
    %19 = vector.broadcast %cst_8 : f32 to vector<8x256xf32>
    %20 = arith.mulf %19, %2 : vector<8x256xf32>
    %21 = arith.addf %18, %20 : vector<8x256xf32>
    %c0_9 = arith.constant 0 : index
    %c1 = arith.constant 1 : index
    %c0_10 = arith.constant 0 : index
    %c0_11 = arith.constant 0 : index
    %22 = vector.load %arg2[%c0_9, %c1, %c0_10, %c0_11] : memref<1x8x8x256xf32, #tpu.memory_space<vmem>>, vector<1x1x8x256xf32>
    %23 = vector.shape_cast %22 : vector<1x1x8x256xf32> to vector<8x256xf32>
    %24 = vector.shape_cast %21 : vector<8x256xf32> to vector<1x1x8x256xf32>
    tpu.vector_store %arg2[%c0_9, %c1, %c0_10, %c0_11], %24 {strides = array<i32>} : memref<1x8x8x256xf32, #tpu.memory_space<vmem>>, vector<1x1x8x256xf32>,
    %cst_12 = arith.constant 1.875000e-01 : f32
    %25 = vector.broadcast %cst_12 : f32 to vector<8x256xf32>
    %26 = arith.mulf %25, %5 : vector<8x256xf32>
    %cst_13 = arith.constant 8.125000e-01 : f32
    %27 = vector.broadcast %cst_13 : f32 to vector<8x256xf32>
    %28 = arith.mulf %27, %2 : vector<8x256xf32>
    %29 = arith.addf %26, %28 : vector<8x256xf32>
    %c0_14 = arith.constant 0 : index
    %c2 = arith.constant 2 : index
    %c0_15 = arith.constant 0 : index
    %c0_16 = arith.constant 0 : index
    %30 = vector.load %arg2[%c0_14, %c2, %c0_15, %c0_16] : memref<1x8x8x256xf32, #tpu.memory_space<vmem>>, vector<1x1x8x256xf32>
    %31 = vector.shape_cast %30 : vector<1x1x8x256xf32> to vector<8x256xf32>
    %32 = vector.shape_cast %29 : vector<8x256xf32> to vector<1x1x8x256xf32>
    tpu.vector_store %arg2[%c0_14, %c2, %c0_15, %c0_16], %32 {strides = array<i32>} : memref<1x8x8x256xf32, #tpu.memory_space<vmem>>, vector<1x1x8x256xf32>,
    %cst_17 = arith.constant 6.250000e-02 : f32
    %33 = vector.broadcast %cst_17 : f32 to vector<8x256xf32>
    %34 = arith.mulf %33, %5 : vector<8x256xf32>
    %cst_18 = arith.constant 9.375000e-01 : f32
    %35 = vector.broadcast %cst_18 : f32 to vector<8x256xf32>
    %36 = arith.mulf %35, %2 : vector<8x256xf32>
    %37 = arith.addf %34, %36 : vector<8x256xf32>
    %c0_19 = arith.constant 0 : index
    %c3 = arith.constant 3 : index
    %c0_20 = arith.constant 0 : index
    %c0_21 = arith.constant 0 : index
    %38 = vector.load %arg2[%c0_19, %c3, %c0_20, %c0_21] : memref<1x8x8x256xf32, #tpu.memory_space<vmem>>, vector<1x1x8x256xf32>
    %39 = vector.shape_cast %38 : vector<1x1x8x256xf32> to vector<8x256xf32>
    %40 = vector.shape_cast %37 : vector<8x256xf32> to vector<1x1x8x256xf32>
    tpu.vector_store %arg2[%c0_19, %c3, %c0_20, %c0_21], %40 {strides = array<i32>} : memref<1x8x8x256xf32, #tpu.memory_space<vmem>>, vector<1x1x8x256xf32>,
    %cst_22 = arith.constant 9.375000e-01 : f32
    %41 = vector.broadcast %cst_22 : f32 to vector<8x256xf32>
    %42 = arith.mulf %41, %2 : vector<8x256xf32>
    %cst_23 = arith.constant 6.250000e-02 : f32
    %43 = vector.broadcast %cst_23 : f32 to vector<8x256xf32>
    %44 = arith.mulf %43, %8 : vector<8x256xf32>
    %45 = arith.addf %42, %44 : vector<8x256xf32>
    %c0_24 = arith.constant 0 : index
    %c4 = arith.constant 4 : index
    %c0_25 = arith.constant 0 : index
    %c0_26 = arith.constant 0 : index
    %46 = vector.load %arg2[%c0_24, %c4, %c0_25, %c0_26] : memref<1x8x8x256xf32, #tpu.memory_space<vmem>>, vector<1x1x8x256xf32>
    %47 = vector.shape_cast %46 : vector<1x1x8x256xf32> to vector<8x256xf32>
    %48 = vector.shape_cast %45 : vector<8x256xf32> to vector<1x1x8x256xf32>
    tpu.vector_store %arg2[%c0_24, %c4, %c0_25, %c0_26], %48 {strides = array<i32>} : memref<1x8x8x256xf32, #tpu.memory_space<vmem>>, vector<1x1x8x256xf32>,
    %cst_27 = arith.constant 8.125000e-01 : f32
    %49 = vector.broadcast %cst_27 : f32 to vector<8x256xf32>
    %50 = arith.mulf %49, %2 : vector<8x256xf32>
    %cst_28 = arith.constant 1.875000e-01 : f32
    %51 = vector.broadcast %cst_28 : f32 to vector<8x256xf32>
    %52 = arith.mulf %51, %8 : vector<8x256xf32>
    %53 = arith.addf %50, %52 : vector<8x256xf32>
    %c0_29 = arith.constant 0 : index
    %c5 = arith.constant 5 : index
    %c0_30 = arith.constant 0 : index
    %c0_31 = arith.constant 0 : index
    %54 = vector.load %arg2[%c0_29, %c5, %c0_30, %c0_31] : memref<1x8x8x256xf32, #tpu.memory_space<vmem>>, vector<1x1x8x256xf32>
    %55 = vector.shape_cast %54 : vector<1x1x8x256xf32> to vector<8x256xf32>
    %56 = vector.shape_cast %53 : vector<8x256xf32> to vector<1x1x8x256xf32>
    tpu.vector_store %arg2[%c0_29, %c5, %c0_30, %c0_31], %56 {strides = array<i32>} : memref<1x8x8x256xf32, #tpu.memory_space<vmem>>, vector<1x1x8x256xf32>,
    %cst_32 = arith.constant 6.875000e-01 : f32
    %57 = vector.broadcast %cst_32 : f32 to vector<8x256xf32>
    %58 = arith.mulf %57, %2 : vector<8x256xf32>
    %cst_33 = arith.constant 3.125000e-01 : f32
    %59 = vector.broadcast %cst_33 : f32 to vector<8x256xf32>
    %60 = arith.mulf %59, %8 : vector<8x256xf32>
    %61 = arith.addf %58, %60 : vector<8x256xf32>
    %c0_34 = arith.constant 0 : index
    %c6 = arith.constant 6 : index
    %c0_35 = arith.constant 0 : index
    %c0_36 = arith.constant 0 : index
    %62 = vector.load %arg2[%c0_34, %c6, %c0_35, %c0_36] : memref<1x8x8x256xf32, #tpu.memory_space<vmem>>, vector<1x1x8x256xf32>
    %63 = vector.shape_cast %62 : vector<1x1x8x256xf32> to vector<8x256xf32>
    %64 = vector.shape_cast %61 : vector<8x256xf32> to vector<1x1x8x256xf32>
    tpu.vector_store %arg2[%c0_34, %c6, %c0_35, %c0_36], %64 {strides = array<i32>} : memref<1x8x8x256xf32, #tpu.memory_space<vmem>>, vector<1x1x8x256xf32>,
    %cst_37 = arith.constant 5.625000e-01 : f32
    %65 = vector.broadcast %cst_37 : f32 to vector<8x256xf32>
    %66 = arith.mulf %65, %2 : vector<8x256xf32>
    %cst_38 = arith.constant 4.375000e-01 : f32
    %67 = vector.broadcast %cst_38 : f32 to vector<8x256xf32>
    %68 = arith.mulf %67, %8 : vector<8x256xf32>
    %69 = arith.addf %66, %68 : vector<8x256xf32>
    %c0_39 = arith.constant 0 : index
    %c7 = arith.constant 7 : index
    %c0_40 = arith.constant 0 : index
    %c0_41 = arith.constant 0 : index
    %70 = vector.load %arg2[%c0_39, %c7, %c0_40, %c0_41] : memref<1x8x8x256xf32, #tpu.memory_space<vmem>>, vector<1x1x8x256xf32>
    %71 = vector.shape_cast %70 : vector<1x1x8x256xf32> to vector<8x256xf32>
    %72 = vector.shape_cast %69 : vector<8x256xf32> to vector<1x1x8x256xf32>
    tpu.vector_store %arg2[%c0_39, %c7, %c0_40, %c0_41], %72 {strides = array<i32>} : memref<1x8x8x256xf32, #tpu.memory_space<vmem>>, vector<1x1x8x256xf32>,
    return
  }
  func.func @transform_0(%arg0: i32) -> (i32, i32, i32) {
    %c0_i32 = arith.constant 0 : i32
    %c0_i32_0 = arith.constant 0 : i32
    %c0_i32_1 = arith.constant 0 : i32
    return %arg0, %c0_i32, %c0_i32_0 : i32, i32, i32
  }
  func.func @transform_1(%arg0: i32) -> (i32, i32, i32, i32) {
    %c0_i32 = arith.constant 0 : i32
    %c0_i32_0 = arith.constant 0 : i32
    %c0_i32_1 = arith.constant 0 : i32
    %c0_i32_2 = arith.constant 0 : i32
    return %arg0, %c0_i32, %c0_i32_0, %c0_i32_1 : i32, i32, i32, i32
  }
}

</mosaic_0001>

<llo_original>
// kernel: timepoint_forward.8
$region0: #{timepoint_forward.8}
  #allocation0 [shape = 'u32[]', space=smem, size = 0x4, offset = 0x4, fixed_abs, tag = 'smem constant byte address 0x4 - core index']
  #allocation1 [shape = 'u32[144,128]{1,0:T(1,128)}', space=vmem, size = 0x12000, scoped, tag = 'internal scratch']
  %s0 = inlined_call_operand.vmem [shape: bf16[16,128], index: 0, kind: input, shape index: {}]
  %s1 = inlined_call_operand.vmem [shape: bf16[128,384], index: 1, kind: input, shape index: {}]
  %s2 = inlined_call_operand.vmem [shape: f32[1,384], index: 2, kind: input, shape index: {}]
  %s3 = inlined_call_operand.vmem [shape: f32[16,384], index: 3, kind: output, shape index: {}]
  %s4 = sld [smem:[#allocation0]]
  $region22: #{timepoint_forward.8} parent=0
    _
  %s6 = ssub.s32 1, %s4
  %s7 = scalar_select 0, %s6, %s4
  // Predicated region
  $region2: #{timepoint_forward.8} parent=0 // pred_check
    _
  $region3: #{timepoint_forward.8} parent=0 // pred_check_branch
    %9 = sbr.rel (0) target = $region5
  $region4: #{timepoint_forward.8} parent=0 // pred_region
    _
  $region5: #{timepoint_forward.8} parent=0 // pred_fallthru
    _
  // Predicated region
  $region6: #{timepoint_forward.8} parent=0 // pred_check
    _
  $region7: #{timepoint_forward.8} parent=0 // pred_check_branch
    %11 = sbr.rel (0) target = $region9
  $region8: #{timepoint_forward.8} parent=0 // pred_region
    _
  $region9: #{timepoint_forward.8} parent=0 // pred_fallthru
    _
  // Predicated region
  $region10: #{timepoint_forward.8} parent=0 // pred_check
    _
  $region11: #{timepoint_forward.8} parent=0 // pred_check_branch
    %13 = sbr.rel (0) target = $region13
  $region12: #{timepoint_forward.8} parent=0 // pred_region
    _
  $region13: #{timepoint_forward.8} parent=0 // pred_fallthru
    _
  %v15 = vld [vmem:[%s0] sm:$0xf]
  %v16 = vld [vmem:[%s0 + $0x4] sm:$0xf]
  %v17 = vld [vmem:[%s1] sm:$0xff]
  %v18 = vld [vmem:[%s1 + $0x8] sm:$0xf]
  %v19 = vld [vmem:[%s1 + $0xc] sm:$0xff]
  %v20 = vld [vmem:[%s1 + $0x14] sm:$0xf]
  %v21 = vld [vmem:[%s1 + $0x18] sm:$0xff]
  %v22 = vld [vmem:[%s1 + $0x20] sm:$0xf]
  %v23 = vld [vmem:[%s1 + $0x24] sm:$0xff]
  %v24 = vld [vmem:[%s1 + $0x2c] sm:$0xf]
  %v25 = vld [vmem:[%s1 + $0x30] sm:$0xff]
  %v26 = vld [vmem:[%s1 + $0x38] sm:$0xf]
  %v27 = vld [vmem:[%s1 + $0x3c] sm:$0xff]
  %v28 = vld [vmem:[%s1 + $0x44] sm:$0xf]
  %v29 = vld [vmem:[%s1 + $0x48] sm:$0xff]
  %v30 = vld [vmem:[%s1 + $0x50] sm:$0xf]
  %v31 = vld [vmem:[%s1 + $0x54] sm:$0xff]
  %v32 = vld [vmem:[%s1 + $0x5c] sm:$0xf]
  %v33 = vld [vmem:[%s1 + $0x60] sm:$0xff]
  %v34 = vld [vmem:[%s1 + $0x68] sm:$0xf]
  %v35 = vld [vmem:[%s1 + $0x6c] sm:$0xff]
  %v36 = vld [vmem:[%s1 + $0x74] sm:$0xf]
  %v37 = vld [vmem:[%s1 + $0x78] sm:$0xff]
  %v38 = vld [vmem:[%s1 + $0x80] sm:$0xf]
  %v39 = vld [vmem:[%s1 + $0x84] sm:$0xff]
  %v40 = vld [vmem:[%s1 + $0x8c] sm:$0xf]
  %v41 = vld [vmem:[%s1 + $0x90] sm:$0xff]
  %v42 = vld [vmem:[%s1 + $0x98] sm:$0xf]
  %v43 = vld [vmem:[%s1 + $0x9c] sm:$0xff]
  %v44 = vld [vmem:[%s1 + $0xa4] sm:$0xf]
  %v45 = vld [vmem:[%s1 + $0xa8] sm:$0xff]
  %v46 = vld [vmem:[%s1 + $0xb0] sm:$0xf]
  %v47 = vld [vmem:[%s1 + $0xb4] sm:$0xff]
  %v48 = vld [vmem:[%s1 + $0xbc] sm:$0xf]
  %v49 = vld [vmem:[%s2] sm:$0x7]
  %v51 = vlaneseq
  %v52 = vshrl.u32 %v51, 7
  %v53 = vsub.s32 0, %v52
  %v54 = vrot.slane %v49, %v53
  %v55 = vlaneseq
  %v56 = vshrl.u32 %v55, 7
  %v57 = vsub.s32 1, %v56
  %v58 = vrot.slane %v49, %v57
  %v59 = vlaneseq
  %v60 = vshrl.u32 %v59, 7
  %v61 = vsub.s32 2, %v60
  %v62 = vrot.slane %v49, %v61
  %v68 = vunpack.c.l.b16 %v15
  %v69 = vunpack.c.l.b16 %v16
  %v70 = vpack.c.b16 %v69, %v68
  %v104 = vunpack.c.l.b16 %v17
  %v105 = vunpack.c.h.b16 %v17
  %v106 = vunpack.c.l.b16 %v18
  %v107 = vunpack.c.l.b16 %v19
  %v108 = vunpack.c.h.b16 %v19
  %v109 = vunpack.c.l.b16 %v20
  %v110 = vunpack.c.l.b16 %v21
  %v111 = vunpack.c.h.b16 %v21
  %v112 = vunpack.c.l.b16 %v22
  %v113 = vunpack.c.l.b16 %v23
  %v114 = vunpack.c.h.b16 %v23
  %v115 = vunpack.c.l.b16 %v24
  %v116 = vunpack.c.l.b16 %v25
  %v117 = vunpack.c.h.b16 %v25
  %v118 = vunpack.c.l.b16 %v26
  %v119 = vunpack.c.l.b16 %v27
  %v120 = vunpack.c.h.b16 %v27
  %v121 = vunpack.c.l.b16 %v28
  %v122 = vunpack.c.l.b16 %v29
  %v123 = vunpack.c.h.b16 %v29
  %v124 = vunpack.c.l.b16 %v30
  %v125 = vunpack.c.l.b16 %v31
  %v126 = vunpack.c.h.b16 %v31
  %v127 = vunpack.c.l.b16 %v32
  %v128 = vunpack.c.l.b16 %v33
  %v129 = vunpack.c.h.b16 %v33
  %v130 = vunpack.c.l.b16 %v34
  %v131 = vunpack.c.l.b16 %v35
  %v132 = vunpack.c.h.b16 %v35
  %v133 = vunpack.c.l.b16 %v36
  %v134 = vunpack.c.l.b16 %v37
  %v135 = vunpack.c.h.b16 %v37
  %v136 = vunpack.c.l.b16 %v38
  %v137 = vunpack.c.l.b16 %v39
  %v138 = vunpack.c.h.b16 %v39
  %v139 = vunpack.c.l.b16 %v40
  %v140 = vunpack.c.l.b16 %v41
  %v141 = vunpack.c.h.b16 %v41
  %v142 = vunpack.c.l.b16 %v42
  %v143 = vunpack.c.l.b16 %v43
  %v144 = vunpack.c.h.b16 %v43
  %v145 = vunpack.c.l.b16 %v44
  %v146 = vunpack.c.l.b16 %v45
  %v147 = vunpack.c.h.b16 %v45
  %v148 = vunpack.c.l.b16 %v46
  %v149 = vunpack.c.l.b16 %v47
  %v150 = vunpack.c.h.b16 %v47
  %v151 = vunpack.c.l.b16 %v48
  %v152 = vpack.c.b16 %v107, %v104
  %v153 = vpack.c.b16 %v108, %v105
  %v154 = vpack.c.b16 %v109, %v106
  %v155 = vpack.c.b16 %v113, %v110
  %v156 = vpack.c.b16 %v114, %v111
  %v157 = vpack.c.b16 %v115, %v112
  %v158 = vpack.c.b16 %v119, %v116
  %v159 = vpack.c.b16 %v120, %v117
  %v160 = vpack.c.b16 %v121, %v118
  %v161 = vpack.c.b16 %v125, %v122
  %v162 = vpack.c.b16 %v126, %v123
  %v163 = vpack.c.b16 %v127, %v124
  %v164 = vpack.c.b16 %v131, %v128
  %v165 = vpack.c.b16 %v132, %v129
  %v166 = vpack.c.b16 %v133, %v130
  %v167 = vpack.c.b16 %v137, %v134
  %v168 = vpack.c.b16 %v138, %v135
  %v169 = vpack.c.b16 %v139, %v136
  %v170 = vpack.c.b16 %v143, %v140
  %v171 = vpack.c.b16 %v144, %v141
  %v172 = vpack.c.b16 %v145, %v142
  %v173 = vpack.c.b16 %v149, %v146
  %v174 = vpack.c.b16 %v150, %v147
  %v175 = vpack.c.b16 %v151, %v148
  %200 = vmatprep.subr.bf16.mxu0 %v174
  %201 = vmatpush1.bf16.msra.mxu0 %v173
  %202 = vmatprep.subr.bf16.mxu0 %v171
  %203 = vmatpush1.bf16.msra.mxu0 %v170
  %204 = vmatprep.subr.bf16.mxu0 %v168
  %205 = vmatpush1.bf16.msra.mxu0 %v167
  %206 = vmatprep.subr.bf16.mxu0 %v165
  %207 = vmatpush1.bf16.msra.mxu0 %v164
  %208 = vmatprep.subr.bf16.mxu0 %v162
  %209 = vmatpush1.bf16.msra.mxu0 %v161
  %210 = vmatprep.subr.bf16.mxu0 %v159
  %211 = vmatpush1.bf16.msra.mxu0 %v158
  %212 = vmatprep.subr.bf16.mxu0 %v156
  %213 = vmatpush1.bf16.msra.mxu0 %v155
  %214 = vmatprep.subr.bf16.mxu0 %v153
  %215 = vmatpush1.bf16.msra.mxu0 %v152
  %216 = vmatprep.subr.bf16.mxu0 0
  %217 = vmatpush2.bf16.msra.mxu0 0
  %218 = vmatprep.subr.bf16.mxu0 0
  %219 = vmatpush2.bf16.msra.mxu0 0
  %220 = vmatprep.subr.bf16.mxu0 0
  %221 = vmatpush2.bf16.msra.mxu0 0
  %222 = vmatprep.subr.bf16.mxu0 0
  %223 = vmatpush2.bf16.msra.mxu0 0
  %224 = vmatprep.subr.bf16.mxu0 0
  %225 = vmatpush2.bf16.msra.mxu0 0
  %226 = vmatprep.subr.bf16.mxu0 0
  %227 = vmatpush2.bf16.msra.mxu0 0
  %228 = vmatprep.subr.bf16.mxu0 0
  %229 = vmatpush2.bf16.msra.mxu0 0
  %230 = vmatprep.subr.bf16.mxu0 0
  %231 = vmatpush2.bf16.msra.mxu0 0
  %232 = vmatprep.mubr.bf16.mxu0 0
  %233 = vmatmul.mubr.bf16.gmra.mxu0 %v70
  %v234 = vpop.f32.mrf.mxu0
  %v235 = vadd.f32 %v54, %v234
  %v236 = vpop.f32.mrf.mxu0
  %v237 = vadd.f32 %v58, %v236
  %v238 = vpop.f32.mrf.mxu0
  %v239 = vadd.f32 %v54, %v238
  %v240 = vpop.f32.mrf.mxu0
  %v241 = vadd.f32 %v58, %v240
  %242 = vdwg.mxu0
  %243 = vmatprep.subr.bf16.mxu0 0
  %244 = vmatpush1.bf16.msra.mxu0 %v175
  %245 = vmatprep.subr.bf16.mxu0 0
  %246 = vmatpush1.bf16.msra.mxu0 %v172
  %247 = vmatprep.subr.bf16.mxu0 0
  %248 = vmatpush1.bf16.msra.mxu0 %v169
  %249 = vmatprep.subr.bf16.mxu0 0
  %250 = vmatpush1.bf16.msra.mxu0 %v166
  %251 = vmatprep.subr.bf16.mxu0 0
  %252 = vmatpush1.bf16.msra.mxu0 %v163
  %253 = vmatprep.subr.bf16.mxu0 0
  %254 = vmatpush1.bf16.msra.mxu0 %v160
  %255 = vmatprep.subr.bf16.mxu0 0
  %256 = vmatpush1.bf16.msra.mxu0 %v157
  %257 = vmatprep.subr.bf16.mxu0 0
  %258 = vmatpush1.bf16.msra.mxu0 %v154
  %259 = vmatprep.subr.bf16.mxu0 0
  %260 = vmatpush2.bf16.msra.mxu0 0
  %261 = vmatprep.subr.bf16.mxu0 0
  %262 = vmatpush2.bf16.msra.mxu0 0
  %263 = vmatprep.subr.bf16.mxu0 0
  %264 = vmatpush2.bf16.msra.mxu0 0
  %265 = vmatprep.subr.bf16.mxu0 0
  %266 = vmatpush2.bf16.msra.mxu0 0
  %267 = vmatprep.subr.bf16.mxu0 0
  %268 = vmatpush2.bf16.msra.mxu0 0
  %269 = vmatprep.subr.bf16.mxu0 0
  %270 = vmatpush2.bf16.msra.mxu0 0
  %271 = vmatprep.subr.bf16.mxu0 0
  %272 = vmatpush2.bf16.msra.mxu0 0
  %273 = vmatprep.subr.bf16.mxu0 0
  %274 = vmatpush2.bf16.msra.mxu0 0
  %275 = vmatprep.mubr.bf16.mxu0 0
  %276 = vmatmul.mubr.bf16.gmra.mxu0 %v70
  %v277 = vpop.f32.mrf.mxu0
  %v278 = vadd.f32 %v62, %v277
  %v279 = vpop.f32.mrf.mxu0
  %v280 = vpop.f32.mrf.mxu0
  %v281 = vadd.f32 %v62, %v280
  %v282 = vpop.f32.mrf.mxu0
  %283 = vdwg.mxu0
  %284 = vst [vmem:[%s3] sm:$0xff] %v235
  %285 = vst [vmem:[%s3 + $0x8] sm:$0xff] %v237
  %286 = vst [vmem:[%s3 + $0x18] sm:$0xff] %v239
  %287 = vst [vmem:[%s3 + $0x20] sm:$0xff] %v241
  %v288 = vxor.u32 %v278, 2147483648
  %v289 = vxor.u32 %v281, 2147483648
  %v290 = vmul.f32 %v288, 1.442695
  %v291 = vpow.pop %v290
  %v292 = vmul.f32 %v289, 1.442695
  %v293 = vpow.pop %v292
  %v294 = vadd.f32 %v291, 1.0
  %v295 = vadd.f32 %v293, 1.0
  %v296 = vrcp.pop %v294
  %v297 = vmul.f32 1.0, %v296
  %v298 = vrcp.pop %v295
  %v299 = vmul.f32 1.0, %v298
  %300 = vst [vmem:[%s3 + $0x10] sm:$0xff] %v297
  %301 = vst [vmem:[%s3 + $0x28] sm:$0xff] %v299
  // Predicated region
  $region14: #{timepoint_forward.8} parent=0 // pred_check
    _
  $region15: #{timepoint_forward.8} parent=0 // pred_check_branch
    %303 = sbr.rel (0) target = $region17
  $region16: #{timepoint_forward.8} parent=0 // pred_region
    _
  $region17: #{timepoint_forward.8} parent=0 // pred_fallthru
    _
  // Predicated region
  $region18: #{timepoint_forward.8} parent=0 // pred_check
    _
  $region19: #{timepoint_forward.8} parent=0 // pred_check_branch
    %305 = sbr.rel (0) target = $region21
  $region20: #{timepoint_forward.8} parent=0 // pred_region
    _
  $region21: #{timepoint_forward.8} parent=0 // pred_fallthru
    _

// kernel: timepoint_forward.6
$region0: #{timepoint_forward.6}
  #allocation0 [shape = 'u32[]', space=smem, size = 0x4, offset = 0x4, fixed_abs, tag = 'smem constant byte address 0x4 - core index']
  #allocation1 [shape = 'u32[144,128]{1,0:T(1,128)}', space=vmem, size = 0x12000, scoped, tag = 'internal scratch']
  %s0 = inlined_call_operand.vmem [shape: bf16[2,16,128], index: 0, kind: input, shape index: {}]
  %s1 = inlined_call_operand.vmem [shape: bf16[192,128], index: 1, kind: input, shape index: {}]
  %s2 = inlined_call_operand.vmem [shape: f32[1,128], index: 2, kind: input, shape index: {}]
  %s3 = inlined_call_operand.vmem [shape: bf16[2,16,128], index: 3, kind: output, shape index: {}]
  %s4 = sld [smem:[#allocation0]]
  $region45: #{timepoint_forward.6} parent=0
    _
  %s6 = ssub.s32 1, %s4
  %s7 = scalar_select 0, %s6, %s4
  loop: start=0, step=1, limit=4
  $region2: #{timepoint_forward.6} parent=0 // loop_pre_header
    _
  $region3: #{timepoint_forward.6} parent=0 // loop_header
    %s9 = sphi 0, %s13
    %p10 = scmp.ge.s32.totalorder %s9, 4
    %s19 = sphi 0, %s21
    %s22 = sphi 0, %s19
    %s23 = sphi 0, %s22
    %s39 = sphi 0, %s23
    %s43 = sphi 0, %s43
    %s45 = sphi 0, %s43
    %s46 = sphi 0, %s45
    %s60 = sphi 0, %s46
    %s64 = sphi 0, %s64
    %s66 = sphi 0, %s64
    %s67 = sphi 0, %s66
    %s81 = sphi 0, %s67
    %s87 = sphi 0, %s89
    %s90 = sphi 0, %s87
    %s91 = sphi 0, %s90
    %s107 = sphi 0, %s91
  $region4: #{timepoint_forward.6} parent=0 // loop_header_branch
    %12 = sbr.rel (%p10) target = $region8
  $region5: #{timepoint_forward.6} parent=0 // loop_body
    %s14 = ssub.s32 %s9, 1
    %s15 = ssub.s32 %s9, 2
    %s16 = sadd.s32 %s9, 1
    %s17 = ssub.s32 %s9, %s16
    %p18 = scmp.eq.s32.totalorder %s17, 0
    %s20 = sadd.s32 %s19, 1
    %s21 = scalar_select %p18, %s19, %s20
    %p24 = pneg %p18
    %p25 = scmp.eq.s32.totalorder %s9, 1
    %p26 = por %p24, %p25
    %p27 = scmp.ne.s32.totalorder %s19, %s22
    %p28 = scmp.eq.s32.totalorder %s9, 0
    %p29 = por %p27, %p28
    %p30 = scmp.ne.s32.totalorder %s19, %s22
    %p31 = scmp.eq.s32.totalorder %s14, 1
    %p32 = por %p30, %p31
    %p33 = scmp.ne.s32.totalorder %s22, %s23
    %p34 = scmp.eq.s32.totalorder %s14, 0
    %p35 = por %p33, %p34
    %p36 = scmp.ne.s32.totalorder %s22, %s23
    %p37 = scmp.eq.s32.totalorder %s15, 1
    %p38 = por %p36, %p37
    %p40 = scmp.ne.s32.totalorder %s23, %s39
    %p41 = scmp.eq.s32.totalorder %s15, 0
    %p42 = por %p40, %p41
    %s44 = sadd.s32 %s43, 1
    %p47 = scmp.eq.s32.totalorder %s9, 1
    %p48 = scmp.ne.s32.totalorder %s43, %s45
    %p49 = scmp.eq.s32.totalorder %s9, 0
    %p50 = por %p48, %p49
    %p51 = scmp.ne.s32.totalorder %s43, %s45
    %p52 = scmp.eq.s32.totalorder %s14, 1
    %p53 = por %p51, %p52
    %p54 = scmp.ne.s32.totalorder %s45, %s46
    %p55 = scmp.eq.s32.totalorder %s14, 0
    %p56 = por %p54, %p55
    %p57 = scmp.ne.s32.totalorder %s45, %s46
    %p58 = scmp.eq.s32.totalorder %s15, 1
    %p59 = por %p57, %p58
    %p61 = scmp.ne.s32.totalorder %s46, %s60
    %p62 = scmp.eq.s32.totalorder %s15, 0
    %p63 = por %p61, %p62
    %s65 = sadd.s32 %s64, 1
    %p68 = scmp.eq.s32.totalorder %s9, 1
    %p69 = scmp.ne.s32.totalorder %s64, %s66
    %p70 = scmp.eq.s32.totalorder %s9, 0
    %p71 = por %p69, %p70
    %p72 = scmp.ne.s32.totalorder %s64, %s66
    %p73 = scmp.eq.s32.totalorder %s14, 1
    %p74 = por %p72, %p73
    %p75 = scmp.ne.s32.totalorder %s66, %s67
    %p76 = scmp.eq.s32.totalorder %s14, 0
    %p77 = por %p75, %p76
    %p78 = scmp.ne.s32.totalorder %s66, %s67
    %p79 = scmp.eq.s32.totalorder %s15, 1
    %p80 = por %p78, %p79
    %p82 = scmp.ne.s32.totalorder %s67, %s81
    %p83 = scmp.eq.s32.totalorder %s15, 0
    %p84 = por %p82, %p83
    %s85 = ssub.s32 %s9, %s16
    %p86 = scmp.eq.s32.totalorder %s85, 0
    %s88 = sadd.s32 %s87, 1
    %s89 = scalar_select %p86, %s87, %s88
    %p92 = pneg %p86
    %p93 = scmp.eq.s32.totalorder %s9, 1
    %p94 = por %p92, %p93
    %p95 = scmp.ne.s32.totalorder %s87, %s90
    %p96 = scmp.eq.s32.totalorder %s9, 0
    %p97 = por %p95, %p96
    %p98 = scmp.ne.s32.totalorder %s87, %s90
    %p99 = scmp.eq.s32.totalorder %s14, 1
    %p100 = por %p98, %p99
    %p101 = scmp.ne.s32.totalorder %s90, %s91
    %p102 = scmp.eq.s32.totalorder %s14, 0
    %p103 = por %p101, %p102
    %p104 = scmp.ne.s32.totalorder %s90, %s91
    %p105 = scmp.eq.s32.totalorder %s15, 1
    %p106 = por %p104, %p105
    %p108 = scmp.ne.s32.totalorder %s91, %s107
    %p109 = scmp.eq.s32.totalorder %s15, 0
    %p110 = por %p108, %p109
    %p111 = scmp.le.s32.totalorder 1, %s9
    %p112 = scmp.lt.s32.totalorder %s9, 3
    %p113 = pnand %p111, %p112
    %p114 = pneg %p113
    // Predicated region
    $region9: #{timepoint_forward.6} parent=5 // pred_check
      _
    $region10: #{timepoint_forward.6} parent=5 // pred_check_branch
      %116 = sbr.rel (%p113) target = $region12
    $region11: #{timepoint_forward.6} parent=5 // pred_region
      %s117 = ssub.s32 %s9, 1
      // Predicated region
      $region13: #{timepoint_forward.6} parent=11 // pred_check
        %p118 = pneg %p56
      $region14: #{timepoint_forward.6} parent=11 // pred_check_branch
        %120 = sbr.rel (%p118) target = $region16
      $region15: #{timepoint_forward.6} parent=11 // pred_region
        _
      $region16: #{timepoint_forward.6} parent=11 // pred_fallthru
        _
      // Predicated region
      $region17: #{timepoint_forward.6} parent=11 // pred_check
        %p121 = pneg %p77
      $region18: #{timepoint_forward.6} parent=11 // pred_check_branch
        %123 = sbr.rel (%p121) target = $region20
      $region19: #{timepoint_forward.6} parent=11 // pred_region
        _
      $region20: #{timepoint_forward.6} parent=11 // pred_fallthru
        _
    $region12: #{timepoint_forward.6} parent=5 // pred_fallthru
      _
    %p124 = scmp.lt.s32.totalorder %s9, 2
    // Predicated region
    $region21: #{timepoint_forward.6} parent=5 // pred_check
      %p125 = pneg %p124
    $region22: #{timepoint_forward.6} parent=5 // pred_check_branch
      %127 = sbr.rel (%p125) target = $region24
    $region23: #{timepoint_forward.6} parent=5 // pred_region
      // Predicated region
      $region25: #{timepoint_forward.6} parent=23 // pred_check
        %p128 = pneg %p29
      $region26: #{timepoint_forward.6} parent=23 // pred_check_branch
        %130 = sbr.rel (%p128) target = $region28
      $region27: #{timepoint_forward.6} parent=23 // pred_region
        %p131 = scmp.lt.s32.totalorder %s9, 1
        %s132 = scalar_select %p131, %s9, 1
        %s133 = smul.addr %s132, 2
        %s134 = smul.addr %s133, 4
        %s135 = scalar_lea.vmem %s0, %s134
      $region28: #{timepoint_forward.6} parent=23 // pred_fallthru
        _
    $region24: #{timepoint_forward.6} parent=5 // pred_fallthru
      _
    %p136 = scmp.le.s32.totalorder 1, %s9
    %p137 = scmp.lt.s32.totalorder %s9, 3
    %p138 = pnand %p136, %p137
    %p139 = pneg %p138
    // Predicated region
    $region29: #{timepoint_forward.6} parent=5 // pred_check
      _
    $region30: #{timepoint_forward.6} parent=5 // pred_check_branch
      %141 = sbr.rel (%p138) target = $region32
    $region31: #{timepoint_forward.6} parent=5 // pred_region
      %s142 = ssub.s32 %s9, 1
      %p143 = scmp.lt.s32.totalorder %s14, 1
      %s144 = scalar_select %p143, %s14, 1
      %s145 = smul.addr %s144, 2
      %s146 = smul.addr %s145, 4
      %s147 = scalar_lea.vmem %s0, %s146
      %p148 = pneg %p35
      %p149 = pneg %p32
      %p150 = pneg %p56
      %p151 = pneg %p53
      %p152 = pneg %p77
      %p153 = pneg %p74
      %p154 = pneg %p103
      %p155 = pneg %p100
      %p156 = scmp.lt.s32.totalorder %s14, 1
      %s157 = scalar_select %p156, %s14, 1
      %s158 = smul.addr %s157, 2
      %s159 = smul.addr %s158, 4
      %s160 = scalar_lea.vmem %s3, %s159
      %p161 = scmp.lt.s32.totalorder %s14, 1
      %s162 = scalar_select %p161, %s14, 1
      %s163 = smul.addr %s162, 2
      %s164 = smul.addr %s163, 4
      %s165 = scalar_lea.vmem %s0, %s164
      %p166 = scmp.lt.s32.totalorder %s14, 1
      %s167 = scalar_select %p166, %s14, 1
      %s168 = smul.addr %s167, 2
      %s169 = smul.addr %s168, 4
      %s170 = scalar_lea.vmem %s3, %s169
      %v172 = vld [vmem:[%s165] sm:$0xf]
      %v173 = vld [vmem:[%s165 + $0x4] sm:$0xf]
      %v176 = vunpack.c.l.b16 %v172
      %v177 = vunpack.c.l.b16 %v173
      %v178 = vpack.c.b16 %v177, %v176
      %v180 = vshrl.u32 %v178, 16
      %v182 = vrot.slane %v180, 7
      %v183 = vshll.u32 %v178, 16
      %v185 = vor.u32 %v182, %v183
      %186 = vrot.lane.b32.xlu0 %v185, 64
      %v187 = vpop.permute.xlu0 %186
      %vm189 = vcmask 1040384
      %vm190 = vsmask.f32 256
      %vm191 = vmand %vm189, %vm190
      %v192 = vsel %vm191, 0, %v187
      %193 = vrot.lane.b32.xlu0 %v178, 64
      %v194 = vpop.permute.xlu0 %193
      %vm195 = vcmask 523264
      %v198 = vsel %vm195, %v192, %v194
      %v200 = vld [vmem:[%s1] sm:$0xf]
      %v201 = vld [vmem:[%s1 + $0x4] sm:$0xf]
      %v202 = vld [vmem:[%s1 + $0x8] sm:$0xf]
      %v203 = vld [vmem:[%s1 + $0xc] sm:$0xf]
      %v204 = vld [vmem:[%s1 + $0x10] sm:$0xf]
      %v205 = vld [vmem:[%s1 + $0x14] sm:$0xf]
      %v206 = vld [vmem:[%s1 + $0x18] sm:$0xf]
      %v207 = vld [vmem:[%s1 + $0x1c] sm:$0xf]
      %v208 = vld [vmem:[%s1 + $0x20] sm:$0xf]
      %v209 = vld [vmem:[%s1 + $0x24] sm:$0xf]
      %v210 = vld [vmem:[%s1 + $0x28] sm:$0xf]
      %v211 = vld [vmem:[%s1 + $0x2c] sm:$0xf]
      %v212 = vld [vmem:[%s1 + $0x30] sm:$0xf]
      %v213 = vld [vmem:[%s1 + $0x34] sm:$0xf]
      %v214 = vld [vmem:[%s1 + $0x38] sm:$0xf]
      %v215 = vld [vmem:[%s1 + $0x3c] sm:$0xf]
      %v216 = vld [vmem:[%s1 + $0x40] sm:$0xf]
      %v217 = vld [vmem:[%s1 + $0x44] sm:$0xf]
      %v218 = vld [vmem:[%s1 + $0x48] sm:$0xf]
      %v219 = vld [vmem:[%s1 + $0x4c] sm:$0xf]
      %v220 = vld [vmem:[%s1 + $0x50] sm:$0xf]
      %v221 = vld [vmem:[%s1 + $0x54] sm:$0xf]
      %v222 = vld [vmem:[%s1 + $0x58] sm:$0xf]
      %v223 = vld [vmem:[%s1 + $0x5c] sm:$0xf]
      %v224 = vld [vmem:[%s2] sm:$0x1]
      %v226 = vlaneseq
      %v227 = vshrl.u32 %v226, 7
      %v228 = vsub.s32 0, %v227
      %v229 = vrot.slane %v224, %v228
      %v255 = vunpack.c.l.b16 %v200
      %v256 = vunpack.c.l.b16 %v201
      %v257 = vunpack.c.l.b16 %v202
      %v258 = vunpack.c.l.b16 %v203
      %v259 = vunpack.c.l.b16 %v204
      %v260 = vunpack.c.l.b16 %v205
      %v261 = vunpack.c.l.b16 %v206
      %v262 = vunpack.c.l.b16 %v207
      %v263 = vunpack.c.l.b16 %v208
      %v264 = vunpack.c.l.b16 %v209
      %v265 = vunpack.c.l.b16 %v210
      %v266 = vunpack.c.l.b16 %v211
      %v267 = vunpack.c.l.b16 %v212
      %v268 = vunpack.c.l.b16 %v213
      %v269 = vunpack.c.l.b16 %v214
      %v270 = vunpack.c.l.b16 %v215
      %v271 = vunpack.c.l.b16 %v216
      %v272 = vunpack.c.l.b16 %v217
      %v273 = vunpack.c.l.b16 %v218
      %v274 = vunpack.c.l.b16 %v219
      %v275 = vunpack.c.l.b16 %v220
      %v276 = vunpack.c.l.b16 %v221
      %v277 = vunpack.c.l.b16 %v222
      %v278 = vunpack.c.l.b16 %v223
      %v279 = vpack.c.b16 %v256, %v255
      %v280 = vpack.c.b16 %v258, %v257
      %v281 = vpack.c.b16 %v260, %v259
      %v282 = vpack.c.b16 %v262, %v261
      %v283 = vpack.c.b16 %v264, %v263
      %v284 = vpack.c.b16 %v266, %v265
      %v285 = vpack.c.b16 %v268, %v267
      %v286 = vpack.c.b16 %v270, %v269
      %v287 = vpack.c.b16 %v272, %v271
      %v288 = vpack.c.b16 %v274, %v273
      %v289 = vpack.c.b16 %v276, %v275
      %v290 = vpack.c.b16 %v278, %v277
      %v303 = vsel %vm195, %v194, 0
      %305 = vmatprep.subr.bf16.mxu0 0
      %306 = vmatpush1.bf16.msra.mxu0 %v286
      %307 = vmatprep.subr.bf16.mxu0 0
      %308 = vmatpush1.bf16.msra.mxu0 %v285
      %309 = vmatprep.subr.bf16.mxu0 0
      %310 = vmatpush1.bf16.msra.mxu0 %v284
      %311 = vmatprep.subr.bf16.mxu0 0
      %312 = vmatpush1.bf16.msra.mxu0 %v283
      %313 = vmatprep.subr.bf16.mxu0 0
      %314 = vmatpush1.bf16.msra.mxu0 %v282
      %315 = vmatprep.subr.bf16.mxu0 0
      %316 = vmatpush1.bf16.msra.mxu0 %v281
      %317 = vmatprep.subr.bf16.mxu0 0
      %318 = vmatpush1.bf16.msra.mxu0 %v280
      %319 = vmatprep.subr.bf16.mxu0 0
      %320 = vmatpush1.bf16.msra.mxu0 %v279
      %321 = vmatprep.subr.bf16.mxu0 0
      %322 = vmatpush2.bf16.msra.mxu0 0
      %323 = vmatprep.subr.bf16.mxu0 0
      %324 = vmatpush2.bf16.msra.mxu0 0
      %325 = vmatprep.subr.bf16.mxu0 0
      %326 = vmatpush2.bf16.msra.mxu0 0
      %327 = vmatprep.subr.bf16.mxu0 0
      %328 = vmatpush2.bf16.msra.mxu0 0
      %329 = vmatprep.subr.bf16.mxu0 0
      %330 = vmatpush2.bf16.msra.mxu0 %v290
      %331 = vmatprep.subr.bf16.mxu0 0
      %332 = vmatpush2.bf16.msra.mxu0 %v289
      %333 = vmatprep.subr.bf16.mxu0 0
      %334 = vmatpush2.bf16.msra.mxu0 %v288
      %335 = vmatprep.subr.bf16.mxu0 0
      %336 = vmatpush2.bf16.msra.mxu0 %v287
      %337 = vmatprep.mubr.bf16.mxu0 %v303
      %338 = vmatmul.mubr.bf16.gmra.mxu0 %v198
      %v339 = vpop.f32.mrf.mxu0
      %v340 = vadd.f32 %v229, %v339
      %v341 = vpop.f32.mrf.mxu0
      %v342 = vpop.f32.mrf.mxu0
      %v343 = vadd.f32 %v229, %v342
      %v344 = vpop.f32.mrf.mxu0
      %345 = vdwg.mxu0
      %v346 = vmax.f32 %v340, 0.0
      %v347 = vmax.f32 %v343, 0.0
      %v348 = vpack.c.bf16 %v347, %v346
      %v350 = vunpack.c.l.b16 %v348
      %v351 = vunpack.c.h.b16 %v348
      %v352 = vpack.c.b16 %v350, %v350
      %v353 = vpack.c.b16 %v351, %v351
      %356 = vst [vmem:[%s170] sm:$0xf] %v352
      %357 = vst [vmem:[%s170 + $0x4] sm:$0xf] %v353
      %p358 = scmp.lt.s32.totalorder %s14, 1
      %s359 = scalar_select %p358, %s14, 1
      %s360 = smul.addr %s359, 2
      %s361 = smul.addr %s360, 4
      %s362 = scalar_lea.vmem %s3, %s361
      // Predicated region
      $region33: #{timepoint_forward.6} parent=31 // pred_check
        %p363 = pneg %p100
      $region34: #{timepoint_forward.6} parent=31 // pred_check_branch
        %365 = sbr.rel (%p363) target = $region36
      $region35: #{timepoint_forward.6} parent=31 // pred_region
        _
      $region36: #{timepoint_forward.6} parent=31 // pred_fallthru
        _
    $region32: #{timepoint_forward.6} parent=5 // pred_fallthru
      _
    %p366 = scmp.le.s32.totalorder 2, %s9
    // Predicated region
    $region37: #{timepoint_forward.6} parent=5 // pred_check
      %p367 = pneg %p366
    $region38: #{timepoint_forward.6} parent=5 // pred_check_branch
      %369 = sbr.rel (%p367) target = $region40
    $region39: #{timepoint_forward.6} parent=5 // pred_region
      %s370 = ssub.s32 %s9, 2
      // Predicated region
      $region41: #{timepoint_forward.6} parent=39 // pred_check
        %p371 = pneg %p106
      $region42: #{timepoint_forward.6} parent=39 // pred_check_branch
        %373 = sbr.rel (%p371) target = $region44
      $region43: #{timepoint_forward.6} parent=39 // pred_region
        %p374 = scmp.lt.s32.totalorder %s15, 1
        %s375 = scalar_select %p374, %s15, 1
        %s376 = smul.addr %s375, 2
        %s377 = smul.addr %s376, 4
        %s378 = scalar_lea.vmem %s3, %s377
      $region44: #{timepoint_forward.6} parent=39 // pred_fallthru
        _
    $region40: #{timepoint_forward.6} parent=5 // pred_fallthru
      _
  $region6: #{timepoint_forward.6} parent=0 // loop_footer
    %s13 = sadd.s32 1, %s9
  $region7: #{timepoint_forward.6} parent=0 // loop_footer_branch
    %8 = sbr.rel target = $region3
  $region8: #{timepoint_forward.6} parent=0 // loop_exit
    _

// kernel: timepoint_forward.7
$region0: #{timepoint_forward.7}
  #allocation0 [shape = 'u32[]', space=smem, size = 0x4, offset = 0x4, fixed_abs, tag = 'smem constant byte address 0x4 - core index']
  #allocation1 [shape = 'u32[144,128]{1,0:T(1,128)}', space=vmem, size = 0x12000, scoped, tag = 'internal scratch']
  %s0 = inlined_call_operand.vmem [shape: bf16[2,8,256], index: 0, kind: input, shape index: {}]
  %s1 = inlined_call_operand.vmem [shape: bf16[384,128], index: 1, kind: input, shape index: {}]
  %s2 = inlined_call_operand.vmem [shape: f32[1,128], index: 2, kind: input, shape index: {}]
  %s3 = inlined_call_operand.vmem [shape: bf16[2,8,128], index: 3, kind: output, shape index: {}]
  %s4 = sld [smem:[#allocation0]]
  $region45: #{timepoint_forward.7} parent=0
    _
  %s6 = ssub.s32 1, %s4
  %s7 = scalar_select 0, %s6, %s4
  loop: start=0, step=1, limit=4
  $region2: #{timepoint_forward.7} parent=0 // loop_pre_header
    _
  $region3: #{timepoint_forward.7} parent=0 // loop_header
    %s9 = sphi 0, %s13
    %p10 = scmp.ge.s32.totalorder %s9, 4
    %s19 = sphi 0, %s21
    %s22 = sphi 0, %s19
    %s23 = sphi 0, %s22
    %s39 = sphi 0, %s23
    %s43 = sphi 0, %s43
    %s45 = sphi 0, %s43
    %s46 = sphi 0, %s45
    %s60 = sphi 0, %s46
    %s64 = sphi 0, %s64
    %s66 = sphi 0, %s64
    %s67 = sphi 0, %s66
    %s81 = sphi 0, %s67
    %s87 = sphi 0, %s89
    %s90 = sphi 0, %s87
    %s91 = sphi 0, %s90
    %s107 = sphi 0, %s91
  $region4: #{timepoint_forward.7} parent=0 // loop_header_branch
    %12 = sbr.rel (%p10) target = $region8
  $region5: #{timepoint_forward.7} parent=0 // loop_body
    %s14 = ssub.s32 %s9, 1
    %s15 = ssub.s32 %s9, 2
    %s16 = sadd.s32 %s9, 1
    %s17 = ssub.s32 %s9, %s16
    %p18 = scmp.eq.s32.totalorder %s17, 0
    %s20 = sadd.s32 %s19, 1
    %s21 = scalar_select %p18, %s19, %s20
    %p24 = pneg %p18
    %p25 = scmp.eq.s32.totalorder %s9, 1
    %p26 = por %p24, %p25
    %p27 = scmp.ne.s32.totalorder %s19, %s22
    %p28 = scmp.eq.s32.totalorder %s9, 0
    %p29 = por %p27, %p28
    %p30 = scmp.ne.s32.totalorder %s19, %s22
    %p31 = scmp.eq.s32.totalorder %s14, 1
    %p32 = por %p30, %p31
    %p33 = scmp.ne.s32.totalorder %s22, %s23
    %p34 = scmp.eq.s32.totalorder %s14, 0
    %p35 = por %p33, %p34
    %p36 = scmp.ne.s32.totalorder %s22, %s23
    %p37 = scmp.eq.s32.totalorder %s15, 1
    %p38 = por %p36, %p37
    %p40 = scmp.ne.s32.totalorder %s23, %s39
    %p41 = scmp.eq.s32.totalorder %s15, 0
    %p42 = por %p40, %p41
    %s44 = sadd.s32 %s43, 1
    %p47 = scmp.eq.s32.totalorder %s9, 1
    %p48 = scmp.ne.s32.totalorder %s43, %s45
    %p49 = scmp.eq.s32.totalorder %s9, 0
    %p50 = por %p48, %p49
    %p51 = scmp.ne.s32.totalorder %s43, %s45
    %p52 = scmp.eq.s32.totalorder %s14, 1
    %p53 = por %p51, %p52
    %p54 = scmp.ne.s32.totalorder %s45, %s46
    %p55 = scmp.eq.s32.totalorder %s14, 0
    %p56 = por %p54, %p55
    %p57 = scmp.ne.s32.totalorder %s45, %s46
    %p58 = scmp.eq.s32.totalorder %s15, 1
    %p59 = por %p57, %p58
    %p61 = scmp.ne.s32.totalorder %s46, %s60
    %p62 = scmp.eq.s32.totalorder %s15, 0
    %p63 = por %p61, %p62
    %s65 = sadd.s32 %s64, 1
    %p68 = scmp.eq.s32.totalorder %s9, 1
    %p69 = scmp.ne.s32.totalorder %s64, %s66
    %p70 = scmp.eq.s32.totalorder %s9, 0
    %p71 = por %p69, %p70
    %p72 = scmp.ne.s32.totalorder %s64, %s66
    %p73 = scmp.eq.s32.totalorder %s14, 1
    %p74 = por %p72, %p73
    %p75 = scmp.ne.s32.totalorder %s66, %s67
    %p76 = scmp.eq.s32.totalorder %s14, 0
    %p77 = por %p75, %p76
    %p78 = scmp.ne.s32.totalorder %s66, %s67
    %p79 = scmp.eq.s32.totalorder %s15, 1
    %p80 = por %p78, %p79
    %p82 = scmp.ne.s32.totalorder %s67, %s81
    %p83 = scmp.eq.s32.totalorder %s15, 0
    %p84 = por %p82, %p83
    %s85 = ssub.s32 %s9, %s16
    %p86 = scmp.eq.s32.totalorder %s85, 0
    %s88 = sadd.s32 %s87, 1
    %s89 = scalar_select %p86, %s87, %s88
    %p92 = pneg %p86
    %p93 = scmp.eq.s32.totalorder %s9, 1
    %p94 = por %p92, %p93
    %p95 = scmp.ne.s32.totalorder %s87, %s90
    %p96 = scmp.eq.s32.totalorder %s9, 0
    %p97 = por %p95, %p96
    %p98 = scmp.ne.s32.totalorder %s87, %s90
    %p99 = scmp.eq.s32.totalorder %s14, 1
    %p100 = por %p98, %p99
    %p101 = scmp.ne.s32.totalorder %s90, %s91
    %p102 = scmp.eq.s32.totalorder %s14, 0
    %p103 = por %p101, %p102
    %p104 = scmp.ne.s32.totalorder %s90, %s91
    %p105 = scmp.eq.s32.totalorder %s15, 1
    %p106 = por %p104, %p105
    %p108 = scmp.ne.s32.totalorder %s91, %s107
    %p109 = scmp.eq.s32.totalorder %s15, 0
    %p110 = por %p108, %p109
    %p111 = scmp.le.s32.totalorder 1, %s9
    %p112 = scmp.lt.s32.totalorder %s9, 3
    %p113 = pnand %p111, %p112
    %p114 = pneg %p113
    // Predicated region
    $region9: #{timepoint_forward.7} parent=5 // pred_check
      _
    $region10: #{timepoint_forward.7} parent=5 // pred_check_branch
      %116 = sbr.rel (%p113) target = $region12
    $region11: #{timepoint_forward.7} parent=5 // pred_region
      %s117 = ssub.s32 %s9, 1
      // Predicated region
      $region13: #{timepoint_forward.7} parent=11 // pred_check
        %p118 = pneg %p56
      $region14: #{timepoint_forward.7} parent=11 // pred_check_branch
        %120 = sbr.rel (%p118) target = $region16
      $region15: #{timepoint_forward.7} parent=11 // pred_region
        _
      $region16: #{timepoint_forward.7} parent=11 // pred_fallthru
        _
      // Predicated region
      $region17: #{timepoint_forward.7} parent=11 // pred_check
        %p121 = pneg %p77
      $region18: #{timepoint_forward.7} parent=11 // pred_check_branch
        %123 = sbr.rel (%p121) target = $region20
      $region19: #{timepoint_forward.7} parent=11 // pred_region
        _
      $region20: #{timepoint_forward.7} parent=11 // pred_fallthru
        _
    $region12: #{timepoint_forward.7} parent=5 // pred_fallthru
      _
    %p124 = scmp.lt.s32.totalorder %s9, 2
    // Predicated region
    $region21: #{timepoint_forward.7} parent=5 // pred_check
      %p125 = pneg %p124
    $region22: #{timepoint_forward.7} parent=5 // pred_check_branch
      %127 = sbr.rel (%p125) target = $region24
    $region23: #{timepoint_forward.7} parent=5 // pred_region
      // Predicated region
      $region25: #{timepoint_forward.7} parent=23 // pred_check
        %p128 = pneg %p29
      $region26: #{timepoint_forward.7} parent=23 // pred_check_branch
        %130 = sbr.rel (%p128) target = $region28
      $region27: #{timepoint_forward.7} parent=23 // pred_region
        %p131 = scmp.lt.s32.totalorder %s9, 1
        %s132 = scalar_select %p131, %s9, 1
        %s133 = smul.addr %s132, 2
        %s134 = smul.addr %s133, 4
        %s135 = scalar_lea.vmem %s0, %s134
      $region28: #{timepoint_forward.7} parent=23 // pred_fallthru
        _
    $region24: #{timepoint_forward.7} parent=5 // pred_fallthru
      _
    %p136 = scmp.le.s32.totalorder 1, %s9
    %p137 = scmp.lt.s32.totalorder %s9, 3
    %p138 = pnand %p136, %p137
    %p139 = pneg %p138
    // Predicated region
    $region29: #{timepoint_forward.7} parent=5 // pred_check
      _
    $region30: #{timepoint_forward.7} parent=5 // pred_check_branch
      %141 = sbr.rel (%p138) target = $region32
    $region31: #{timepoint_forward.7} parent=5 // pred_region
      %s142 = ssub.s32 %s9, 1
      %p143 = scmp.lt.s32.totalorder %s14, 1
      %s144 = scalar_select %p143, %s14, 1
      %s145 = smul.addr %s144, 2
      %s146 = smul.addr %s145, 4
      %s147 = scalar_lea.vmem %s0, %s146
      %p148 = pneg %p35
      %p149 = pneg %p32
      %p150 = pneg %p56
      %p151 = pneg %p53
      %p152 = pneg %p77
      %p153 = pneg %p74
      %p154 = pneg %p103
      %p155 = pneg %p100
      %p156 = scmp.lt.s32.totalorder %s14, 1
      %s157 = scalar_select %p156, %s14, 1
      %s158 = smul.addr %s157, 4
      %s159 = scalar_lea.vmem %s3, %s158
      %p160 = scmp.lt.s32.totalorder %s14, 1
      %s161 = scalar_select %p160, %s14, 1
      %s162 = smul.addr %s161, 2
      %s163 = smul.addr %s162, 4
      %s164 = scalar_lea.vmem %s0, %s163
      %p165 = scmp.lt.s32.totalorder %s14, 1
      %s166 = scalar_select %p165, %s14, 1
      %s167 = smul.addr %s166, 4
      %s168 = scalar_lea.vmem %s3, %s167
      %v170 = vld [vmem:[%s164] sm:$0xff]
      %v172 = vunpack.c.h.b16 %v170
      %v173 = vpack.c.b16 %v172, %v172
      %v175 = vshrl.u32 %v173, 16
      %v177 = vrot.slane %v175, 7
      %v178 = vshll.u32 %v173, 16
      %v180 = vor.u32 %v177, %v178
      %vm182 = vcmask 1040384
      %vm183 = vsmask.f32 256
      %vm184 = vmand %vm182, %vm183
      %v185 = vsel %vm184, 0, %v180
      %v186 = vunpack.c.l.b16 %v170
      %v187 = vpack.c.b16 %v186, %v186
      %v190 = vld [vmem:[%s1] sm:$0xf]
      %v191 = vld [vmem:[%s1 + $0x4] sm:$0xf]
      %v192 = vld [vmem:[%s1 + $0x8] sm:$0xf]
      %v193 = vld [vmem:[%s1 + $0xc] sm:$0xf]
      %v194 = vld [vmem:[%s1 + $0x10] sm:$0xf]
      %v195 = vld [vmem:[%s1 + $0x14] sm:$0xf]
      %v196 = vld [vmem:[%s1 + $0x18] sm:$0xf]
      %v197 = vld [vmem:[%s1 + $0x1c] sm:$0xf]
      %v198 = vld [vmem:[%s1 + $0x20] sm:$0xf]
      %v199 = vld [vmem:[%s1 + $0x24] sm:$0xf]
      %v200 = vld [vmem:[%s1 + $0x28] sm:$0xf]
      %v201 = vld [vmem:[%s1 + $0x2c] sm:$0xf]
      %v202 = vld [vmem:[%s1 + $0x30] sm:$0xf]
      %v203 = vld [vmem:[%s1 + $0x34] sm:$0xf]
      %v204 = vld [vmem:[%s1 + $0x38] sm:$0xf]
      %v205 = vld [vmem:[%s1 + $0x3c] sm:$0xf]
      %v206 = vld [vmem:[%s1 + $0x40] sm:$0xf]
      %v207 = vld [vmem:[%s1 + $0x44] sm:$0xf]
      %v208 = vld [vmem:[%s1 + $0x48] sm:$0xf]
      %v209 = vld [vmem:[%s1 + $0x4c] sm:$0xf]
      %v210 = vld [vmem:[%s1 + $0x50] sm:$0xf]
      %v211 = vld [vmem:[%s1 + $0x54] sm:$0xf]
      %v212 = vld [vmem:[%s1 + $0x58] sm:$0xf]
      %v213 = vld [vmem:[%s1 + $0x5c] sm:$0xf]
      %v214 = vld [vmem:[%s1 + $0x60] sm:$0xf]
      %v215 = vld [vmem:[%s1 + $0x64] sm:$0xf]
      %v216 = vld [vmem:[%s1 + $0x68] sm:$0xf]
      %v217 = vld [vmem:[%s1 + $0x6c] sm:$0xf]
      %v218 = vld [vmem:[%s1 + $0x70] sm:$0xf]
      %v219 = vld [vmem:[%s1 + $0x74] sm:$0xf]
      %v220 = vld [vmem:[%s1 + $0x78] sm:$0xf]
      %v221 = vld [vmem:[%s1 + $0x7c] sm:$0xf]
      %v222 = vld [vmem:[%s1 + $0x80] sm:$0xf]
      %v223 = vld [vmem:[%s1 + $0x84] sm:$0xf]
      %v224 = vld [vmem:[%s1 + $0x88] sm:$0xf]
      %v225 = vld [vmem:[%s1 + $0x8c] sm:$0xf]
      %v226 = vld [vmem:[%s1 + $0x90] sm:$0xf]
      %v227 = vld [vmem:[%s1 + $0x94] sm:$0xf]
      %v228 = vld [vmem:[%s1 + $0x98] sm:$0xf]
      %v229 = vld [vmem:[%s1 + $0x9c] sm:$0xf]
      %v230 = vld [vmem:[%s1 + $0xa0] sm:$0xf]
      %v231 = vld [vmem:[%s1 + $0xa4] sm:$0xf]
      %v232 = vld [vmem:[%s1 + $0xa8] sm:$0xf]
      %v233 = vld [vmem:[%s1 + $0xac] sm:$0xf]
      %v234 = vld [vmem:[%s1 + $0xb0] sm:$0xf]
      %v235 = vld [vmem:[%s1 + $0xb4] sm:$0xf]
      %v236 = vld [vmem:[%s1 + $0xb8] sm:$0xf]
      %v237 = vld [vmem:[%s1 + $0xbc] sm:$0xf]
      %v238 = vld [vmem:[%s2] sm:$0x1]
      %v240 = vlaneseq
      %v241 = vshrl.u32 %v240, 7
      %v242 = vsub.s32 0, %v241
      %v243 = vrot.slane %v238, %v242
      %v293 = vunpack.c.l.b16 %v190
      %v294 = vunpack.c.l.b16 %v191
      %v295 = vunpack.c.l.b16 %v192
      %v296 = vunpack.c.l.b16 %v193
      %v297 = vunpack.c.l.b16 %v194
      %v298 = vunpack.c.l.b16 %v195
      %v299 = vunpack.c.l.b16 %v196
      %v300 = vunpack.c.l.b16 %v197
      %v301 = vunpack.c.l.b16 %v198
      %v302 = vunpack.c.l.b16 %v199
      %v303 = vunpack.c.l.b16 %v200
      %v304 = vunpack.c.l.b16 %v201
      %v305 = vunpack.c.l.b16 %v202
      %v306 = vunpack.c.l.b16 %v203
      %v307 = vunpack.c.l.b16 %v204
      %v308 = vunpack.c.l.b16 %v205
      %v309 = vunpack.c.l.b16 %v206
      %v310 = vunpack.c.l.b16 %v207
      %v311 = vunpack.c.l.b16 %v208
      %v312 = vunpack.c.l.b16 %v209
      %v313 = vunpack.c.l.b16 %v210
      %v314 = vunpack.c.l.b16 %v211
      %v315 = vunpack.c.l.b16 %v212
      %v316 = vunpack.c.l.b16 %v213
      %v317 = vunpack.c.l.b16 %v214
      %v318 = vunpack.c.l.b16 %v215
      %v319 = vunpack.c.l.b16 %v216
      %v320 = vunpack.c.l.b16 %v217
      %v321 = vunpack.c.l.b16 %v218
      %v322 = vunpack.c.l.b16 %v219
      %v323 = vunpack.c.l.b16 %v220
      %v324 = vunpack.c.l.b16 %v221
      %v325 = vunpack.c.l.b16 %v222
      %v326 = vunpack.c.l.b16 %v223
      %v327 = vunpack.c.l.b16 %v224
      %v328 = vunpack.c.l.b16 %v225
      %v329 = vunpack.c.l.b16 %v226
      %v330 = vunpack.c.l.b16 %v227
      %v331 = vunpack.c.l.b16 %v228
      %v332 = vunpack.c.l.b16 %v229
      %v333 = vunpack.c.l.b16 %v230
      %v334 = vunpack.c.l.b16 %v231
      %v335 = vunpack.c.l.b16 %v232
      %v336 = vunpack.c.l.b16 %v233
      %v337 = vunpack.c.l.b16 %v234
      %v338 = vunpack.c.l.b16 %v235
      %v339 = vunpack.c.l.b16 %v236
      %v340 = vunpack.c.l.b16 %v237
      %v341 = vpack.c.b16 %v294, %v293
      %v342 = vpack.c.b16 %v296, %v295
      %v343 = vpack.c.b16 %v298, %v297
      %v344 = vpack.c.b16 %v300, %v299
      %v345 = vpack.c.b16 %v302, %v301
      %v346 = vpack.c.b16 %v304, %v303
      %v347 = vpack.c.b16 %v306, %v305
      %v348 = vpack.c.b16 %v308, %v307
      %v349 = vpack.c.b16 %v310, %v309
      %v350 = vpack.c.b16 %v312, %v311
      %v351 = vpack.c.b16 %v314, %v313
      %v352 = vpack.c.b16 %v316, %v315
      %v353 = vpack.c.b16 %v318, %v317
      %v354 = vpack.c.b16 %v320, %v319
      %v355 = vpack.c.b16 %v322, %v321
      %v356 = vpack.c.b16 %v324, %v323
      %v357 = vpack.c.b16 %v326, %v325
      %v358 = vpack.c.b16 %v328, %v327
      %v359 = vpack.c.b16 %v330, %v329
      %v360 = vpack.c.b16 %v332, %v331
      %v361 = vpack.c.b16 %v334, %v333
      %v362 = vpack.c.b16 %v336, %v335
      %v363 = vpack.c.b16 %v338, %v337
      %v364 = vpack.c.b16 %v340, %v339
      %389 = vmatprep.subr.bf16.mxu0 0
      %390 = vmatpush1.bf16.msra.mxu0 %v348
      %391 = vmatprep.subr.bf16.mxu0 0
      %392 = vmatpush1.bf16.msra.mxu0 %v347
      %393 = vmatprep.subr.bf16.mxu0 0
      %394 = vmatpush1.bf16.msra.mxu0 %v346
      %395 = vmatprep.subr.bf16.mxu0 0
      %396 = vmatpush1.bf16.msra.mxu0 %v345
      %397 = vmatprep.subr.bf16.mxu0 0
      %398 = vmatpush1.bf16.msra.mxu0 %v344
      %399 = vmatprep.subr.bf16.mxu0 0
      %400 = vmatpush1.bf16.msra.mxu0 %v343
      %401 = vmatprep.subr.bf16.mxu0 0
      %402 = vmatpush1.bf16.msra.mxu0 %v342
      %403 = vmatprep.subr.bf16.mxu0 0
      %404 = vmatpush1.bf16.msra.mxu0 %v341
      %405 = vmatprep.subr.bf16.mxu0 0
      %406 = vmatpush2.bf16.msra.mxu0 %v356
      %407 = vmatprep.subr.bf16.mxu0 0
      %408 = vmatpush2.bf16.msra.mxu0 %v355
      %409 = vmatprep.subr.bf16.mxu0 0
      %410 = vmatpush2.bf16.msra.mxu0 %v354
      %411 = vmatprep.subr.bf16.mxu0 0
      %412 = vmatpush2.bf16.msra.mxu0 %v353
      %413 = vmatprep.subr.bf16.mxu0 0
      %414 = vmatpush2.bf16.msra.mxu0 %v352
      %415 = vmatprep.subr.bf16.mxu0 0
      %416 = vmatpush2.bf16.msra.mxu0 %v351
      %417 = vmatprep.subr.bf16.mxu0 0
      %418 = vmatpush2.bf16.msra.mxu0 %v350
      %419 = vmatprep.subr.bf16.mxu0 0
      %420 = vmatpush2.bf16.msra.mxu0 %v349
      %421 = vmatprep.mubr.bf16.mxu0 %v187
      %422 = vmatmul.mubr.bf16.gmra.mxu0 %v185
      %v423 = vpop.f32.mrf.mxu0
      %v424 = vadd.f32 %v243, %v423
      %v425 = vpop.f32.mrf.mxu0
      %v426 = vpop.f32.mrf.mxu0
      %v427 = vpop.f32.mrf.mxu0
      %428 = vdwg.mxu0
      %429 = vmatprep.subr.bf16.mxu0 0
      %430 = vmatpush1.bf16.msra.mxu0 %v364
      %431 = vmatprep.subr.bf16.mxu0 0
      %432 = vmatpush1.bf16.msra.mxu0 %v363
      %433 = vmatprep.subr.bf16.mxu0 0
      %434 = vmatpush1.bf16.msra.mxu0 %v362
      %435 = vmatprep.subr.bf16.mxu0 0
      %436 = vmatpush1.bf16.msra.mxu0 %v361
      %437 = vmatprep.subr.bf16.mxu0 0
      %438 = vmatpush1.bf16.msra.mxu0 %v360
      %439 = vmatprep.subr.bf16.mxu0 0
      %440 = vmatpush1.bf16.msra.mxu0 %v359
      %441 = vmatprep.subr.bf16.mxu0 0
      %442 = vmatpush1.bf16.msra.mxu0 %v358
      %443 = vmatprep.subr.bf16.mxu0 0
      %444 = vmatpush1.bf16.msra.mxu0 %v357
      %445 = vmatprep.subr.bf16.mxu0 0
      %446 = vmatpush2.bf16.msra.mxu0 0
      %447 = vmatprep.subr.bf16.mxu0 0
      %448 = vmatpush2.bf16.msra.mxu0 0
      %449 = vmatprep.subr.bf16.mxu0 0
      %450 = vmatpush2.bf16.msra.mxu0 0
      %451 = vmatprep.subr.bf16.mxu0 0
      %452 = vmatpush2.bf16.msra.mxu0 0
      %453 = vmatprep.subr.bf16.mxu0 0
      %454 = vmatpush2.bf16.msra.mxu0 0
      %455 = vmatprep.subr.bf16.mxu0 0
      %456 = vmatpush2.bf16.msra.mxu0 0
      %457 = vmatprep.subr.bf16.mxu0 0
      %458 = vmatpush2.bf16.msra.mxu0 0
      %459 = vmatprep.subr.bf16.mxu0 0
      %460 = vmatpush2.bf16.msra.mxu0 0
      %461 = vmatprep.mubr.bf16.mxu0 0
      %462 = vmatmul.mubr.bf16.gmra.mxu0 %v173
      %v463 = vpop.f32.mrf.mxu0
      %v464 = vadd.f32 %v424, %v463
      %v465 = vpop.f32.mrf.mxu0
      %v466 = vpop.f32.mrf.mxu0
      %v467 = vpop.f32.mrf.mxu0
      %468 = vdwg.mxu0
      %v469 = vmax.f32 %v464, 0.0
      %v470 = vpack.c.bf16 %v469, %v469
      %471 = vst [vmem:[%s168] sm:$0xf] %v470
      %p472 = scmp.lt.s32.totalorder %s14, 1
      %s473 = scalar_select %p472, %s14, 1
      %s474 = smul.addr %s473, 4
      %s475 = scalar_lea.vmem %s3, %s474
      // Predicated region
      $region33: #{timepoint_forward.7} parent=31 // pred_check
        %p476 = pneg %p100
      $region34: #{timepoint_forward.7} parent=31 // pred_check_branch
        %478 = sbr.rel (%p476) target = $region36
      $region35: #{timepoint_forward.7} parent=31 // pred_region
        _
      $region36: #{timepoint_forward.7} parent=31 // pred_fallthru
        _
    $region32: #{timepoint_forward.7} parent=5 // pred_fallthru
      _
    %p479 = scmp.le.s32.totalorder 2, %s9
    // Predicated region
    $region37: #{timepoint_forward.7} parent=5 // pred_check
      %p480 = pneg %p479
    $region38: #{timepoint_forward.7} parent=5 // pred_check_branch
      %482 = sbr.rel (%p480) target = $region40
    $region39: #{timepoint_forward.7} parent=5 // pred_region
      %s483 = ssub.s32 %s9, 2
      // Predicated region
      $region41: #{timepoint_forward.7} parent=39 // pred_check
        %p484 = pneg %p106
      $region42: #{timepoint_forward.7} parent=39 // pred_check_branch
        %486 = sbr.rel (%p484) target = $region44
      $region43: #{timepoint_forward.7} parent=39 // pred_region
        %p487 = scmp.lt.s32.totalorder %s15, 1
        %s488 = scalar_select %p487, %s15, 1
        %s489 = smul.addr %s488, 4
        %s490 = scalar_lea.vmem %s3, %s489
      $region44: #{timepoint_forward.7} parent=39 // pred_fallthru
        _
    $region40: #{timepoint_forward.7} parent=5 // pred_fallthru
      _
  $region6: #{timepoint_forward.7} parent=0 // loop_footer
    %s13 = sadd.s32 1, %s9
  $region7: #{timepoint_forward.7} parent=0 // loop_footer_branch
    %8 = sbr.rel target = $region3
  $region8: #{timepoint_forward.7} parent=0 // loop_exit
    _

// kernel: timepoint_forward.5
$region0: #{timepoint_forward.5}
  #allocation0 [shape = 'u32[]', space=smem, size = 0x4, offset = 0x4, fixed_abs, tag = 'smem constant byte address 0x4 - core index']
  #allocation1 [shape = 'u32[144,128]{1,0:T(1,128)}', space=vmem, size = 0x12000, scoped, tag = 'internal scratch']
  %s0 = inlined_call_operand.vmem [shape: f32[2,32,2], index: 0, kind: input, shape index: {}]
  %s1 = inlined_call_operand.vmem [shape: f32[3,64], index: 1, kind: input, shape index: {}]
  %s2 = inlined_call_operand.vmem [shape: f32[1,64], index: 2, kind: input, shape index: {}]
  %s3 = inlined_call_operand.vmem [shape: bf16[192,64], index: 3, kind: input, shape index: {}]
  %s4 = inlined_call_operand.vmem [shape: f32[1,64], index: 4, kind: input, shape index: {}]
  %s5 = inlined_call_operand.vmem [shape: bf16[2,32,64], index: 5, kind: output, shape index: {}]
  %s6 = sld [smem:[#allocation0]]
  $region53: #{timepoint_forward.5} parent=0
    _
  %s8 = ssub.s32 1, %s6
  %s9 = scalar_select 0, %s8, %s6
  loop: start=0, step=1, limit=4
  $region2: #{timepoint_forward.5} parent=0 // loop_pre_header
    _
  $region3: #{timepoint_forward.5} parent=0 // loop_header
    %s11 = sphi 0, %s15
    %p12 = scmp.ge.s32.totalorder %s11, 4
    %s21 = sphi 0, %s23
    %s24 = sphi 0, %s21
    %s25 = sphi 0, %s24
    %s41 = sphi 0, %s25
    %s45 = sphi 0, %s45
    %s47 = sphi 0, %s45
    %s48 = sphi 0, %s47
    %s62 = sphi 0, %s48
    %s66 = sphi 0, %s66
    %s68 = sphi 0, %s66
    %s69 = sphi 0, %s68
    %s83 = sphi 0, %s69
    %s87 = sphi 0, %s87
    %s89 = sphi 0, %s87
    %s90 = sphi 0, %s89
    %s104 = sphi 0, %s90
    %s108 = sphi 0, %s108
    %s110 = sphi 0, %s108
    %s111 = sphi 0, %s110
    %s125 = sphi 0, %s111
    %s131 = sphi 0, %s133
    %s134 = sphi 0, %s131
    %s135 = sphi 0, %s134
    %s151 = sphi 0, %s135
  $region4: #{timepoint_forward.5} parent=0 // loop_header_branch
    %14 = sbr.rel (%p12) target = $region8
  $region5: #{timepoint_forward.5} parent=0 // loop_body
    %s16 = ssub.s32 %s11, 1
    %s17 = ssub.s32 %s11, 2
    %s18 = sadd.s32 %s11, 1
    %s19 = ssub.s32 %s11, %s18
    %p20 = scmp.eq.s32.totalorder %s19, 0
    %s22 = sadd.s32 %s21, 1
    %s23 = scalar_select %p20, %s21, %s22
    %p26 = pneg %p20
    %p27 = scmp.eq.s32.totalorder %s11, 1
    %p28 = por %p26, %p27
    %p29 = scmp.ne.s32.totalorder %s21, %s24
    %p30 = scmp.eq.s32.totalorder %s11, 0
    %p31 = por %p29, %p30
    %p32 = scmp.ne.s32.totalorder %s21, %s24
    %p33 = scmp.eq.s32.totalorder %s16, 1
    %p34 = por %p32, %p33
    %p35 = scmp.ne.s32.totalorder %s24, %s25
    %p36 = scmp.eq.s32.totalorder %s16, 0
    %p37 = por %p35, %p36
    %p38 = scmp.ne.s32.totalorder %s24, %s25
    %p39 = scmp.eq.s32.totalorder %s17, 1
    %p40 = por %p38, %p39
    %p42 = scmp.ne.s32.totalorder %s25, %s41
    %p43 = scmp.eq.s32.totalorder %s17, 0
    %p44 = por %p42, %p43
    %s46 = sadd.s32 %s45, 1
    %p49 = scmp.eq.s32.totalorder %s11, 1
    %p50 = scmp.ne.s32.totalorder %s45, %s47
    %p51 = scmp.eq.s32.totalorder %s11, 0
    %p52 = por %p50, %p51
    %p53 = scmp.ne.s32.totalorder %s45, %s47
    %p54 = scmp.eq.s32.totalorder %s16, 1
    %p55 = por %p53, %p54
    %p56 = scmp.ne.s32.totalorder %s47, %s48
    %p57 = scmp.eq.s32.totalorder %s16, 0
    %p58 = por %p56, %p57
    %p59 = scmp.ne.s32.totalorder %s47, %s48
    %p60 = scmp.eq.s32.totalorder %s17, 1
    %p61 = por %p59, %p60
    %p63 = scmp.ne.s32.totalorder %s48, %s62
    %p64 = scmp.eq.s32.totalorder %s17, 0
    %p65 = por %p63, %p64
    %s67 = sadd.s32 %s66, 1
    %p70 = scmp.eq.s32.totalorder %s11, 1
    %p71 = scmp.ne.s32.totalorder %s66, %s68
    %p72 = scmp.eq.s32.totalorder %s11, 0
    %p73 = por %p71, %p72
    %p74 = scmp.ne.s32.totalorder %s66, %s68
    %p75 = scmp.eq.s32.totalorder %s16, 1
    %p76 = por %p74, %p75
    %p77 = scmp.ne.s32.totalorder %s68, %s69
    %p78 = scmp.eq.s32.totalorder %s16, 0
    %p79 = por %p77, %p78
    %p80 = scmp.ne.s32.totalorder %s68, %s69
    %p81 = scmp.eq.s32.totalorder %s17, 1
    %p82 = por %p80, %p81
    %p84 = scmp.ne.s32.totalorder %s69, %s83
    %p85 = scmp.eq.s32.totalorder %s17, 0
    %p86 = por %p84, %p85
    %s88 = sadd.s32 %s87, 1
    %p91 = scmp.eq.s32.totalorder %s11, 1
    %p92 = scmp.ne.s32.totalorder %s87, %s89
    %p93 = scmp.eq.s32.totalorder %s11, 0
    %p94 = por %p92, %p93
    %p95 = scmp.ne.s32.totalorder %s87, %s89
    %p96 = scmp.eq.s32.totalorder %s16, 1
    %p97 = por %p95, %p96
    %p98 = scmp.ne.s32.totalorder %s89, %s90
    %p99 = scmp.eq.s32.totalorder %s16, 0
    %p100 = por %p98, %p99
    %p101 = scmp.ne.s32.totalorder %s89, %s90
    %p102 = scmp.eq.s32.totalorder %s17, 1
    %p103 = por %p101, %p102
    %p105 = scmp.ne.s32.totalorder %s90, %s104
    %p106 = scmp.eq.s32.totalorder %s17, 0
    %p107 = por %p105, %p106
    %s109 = sadd.s32 %s108, 1
    %p112 = scmp.eq.s32.totalorder %s11, 1
    %p113 = scmp.ne.s32.totalorder %s108, %s110
    %p114 = scmp.eq.s32.totalorder %s11, 0
    %p115 = por %p113, %p114
    %p116 = scmp.ne.s32.totalorder %s108, %s110
    %p117 = scmp.eq.s32.totalorder %s16, 1
    %p118 = por %p116, %p117
    %p119 = scmp.ne.s32.totalorder %s110, %s111
    %p120 = scmp.eq.s32.totalorder %s16, 0
    %p121 = por %p119, %p120
    %p122 = scmp.ne.s32.totalorder %s110, %s111
    %p123 = scmp.eq.s32.totalorder %s17, 1
    %p124 = por %p122, %p123
    %p126 = scmp.ne.s32.totalorder %s111, %s125
    %p127 = scmp.eq.s32.totalorder %s17, 0
    %p128 = por %p126, %p127
    %s129 = ssub.s32 %s11, %s18
    %p130 = scmp.eq.s32.totalorder %s129, 0
    %s132 = sadd.s32 %s131, 1
    %s133 = scalar_select %p130, %s131, %s132
    %p136 = pneg %p130
    %p137 = scmp.eq.s32.totalorder %s11, 1
    %p138 = por %p136, %p137
    %p139 = scmp.ne.s32.totalorder %s131, %s134
    %p140 = scmp.eq.s32.totalorder %s11, 0
    %p141 = por %p139, %p140
    %p142 = scmp.ne.s32.totalorder %s131, %s134
    %p143 = scmp.eq.s32.totalorder %s16, 1
    %p144 = por %p142, %p143
    %p145 = scmp.ne.s32.totalorder %s134, %s135
    %p146 = scmp.eq.s32.totalorder %s16, 0
    %p147 = por %p145, %p146
    %p148 = scmp.ne.s32.totalorder %s134, %s135
    %p149 = scmp.eq.s32.totalorder %s17, 1
    %p150 = por %p148, %p149
    %p152 = scmp.ne.s32.totalorder %s135, %s151
    %p153 = scmp.eq.s32.totalorder %s17, 0
    %p154 = por %p152, %p153
    %p155 = scmp.le.s32.totalorder 1, %s11
    %p156 = scmp.lt.s32.totalorder %s11, 3
    %p157 = pnand %p155, %p156
    %p158 = pneg %p157
    // Predicated region
    $region9: #{timepoint_forward.5} parent=5 // pred_check
      _
    $region10: #{timepoint_forward.5} parent=5 // pred_check_branch
      %160 = sbr.rel (%p157) target = $region12
    $region11: #{timepoint_forward.5} parent=5 // pred_region
      %s161 = ssub.s32 %s11, 1
      // Predicated region
      $region13: #{timepoint_forward.5} parent=11 // pred_check
        %p162 = pneg %p58
      $region14: #{timepoint_forward.5} parent=11 // pred_check_branch
        %164 = sbr.rel (%p162) target = $region16
      $region15: #{timepoint_forward.5} parent=11 // pred_region
        _
      $region16: #{timepoint_forward.5} parent=11 // pred_fallthru
        _
      // Predicated region
      $region17: #{timepoint_forward.5} parent=11 // pred_check
        %p165 = pneg %p79
      $region18: #{timepoint_forward.5} parent=11 // pred_check_branch
        %167 = sbr.rel (%p165) target = $region20
      $region19: #{timepoint_forward.5} parent=11 // pred_region
        _
      $region20: #{timepoint_forward.5} parent=11 // pred_fallthru
        _
      // Predicated region
      $region21: #{timepoint_forward.5} parent=11 // pred_check
        %p168 = pneg %p100
      $region22: #{timepoint_forward.5} parent=11 // pred_check_branch
        %170 = sbr.rel (%p168) target = $region24
      $region23: #{timepoint_forward.5} parent=11 // pred_region
        _
      $region24: #{timepoint_forward.5} parent=11 // pred_fallthru
        _
      // Predicated region
      $region25: #{timepoint_forward.5} parent=11 // pred_check
        %p171 = pneg %p121
      $region26: #{timepoint_forward.5} parent=11 // pred_check_branch
        %173 = sbr.rel (%p171) target = $region28
      $region27: #{timepoint_forward.5} parent=11 // pred_region
        _
      $region28: #{timepoint_forward.5} parent=11 // pred_fallthru
        _
    $region12: #{timepoint_forward.5} parent=5 // pred_fallthru
      _
    %p174 = scmp.lt.s32.totalorder %s11, 2
    // Predicated region
    $region29: #{timepoint_forward.5} parent=5 // pred_check
      %p175 = pneg %p174
    $region30: #{timepoint_forward.5} parent=5 // pred_check_branch
      %177 = sbr.rel (%p175) target = $region32
    $region31: #{timepoint_forward.5} parent=5 // pred_region
      // Predicated region
      $region33: #{timepoint_forward.5} parent=31 // pred_check
        %p178 = pneg %p31
      $region34: #{timepoint_forward.5} parent=31 // pred_check_branch
        %180 = sbr.rel (%p178) target = $region36
      $region35: #{timepoint_forward.5} parent=31 // pred_region
        %p181 = scmp.lt.s32.totalorder %s11, 1
        %s182 = scalar_select %p181, %s11, 1
        %s183 = smul.addr %s182, 4
        %s184 = smul.addr %s183, 8
        %s185 = scalar_lea.vmem %s0, %s184
      $region36: #{timepoint_forward.5} parent=31 // pred_fallthru
        _
    $region32: #{timepoint_forward.5} parent=5 // pred_fallthru
      _
    %p186 = scmp.le.s32.totalorder 1, %s11
    %p187 = scmp.lt.s32.totalorder %s11, 3
    %p188 = pnand %p186, %p187
    %p189 = pneg %p188
    // Predicated region
    $region37: #{timepoint_forward.5} parent=5 // pred_check
      _
    $region38: #{timepoint_forward.5} parent=5 // pred_check_branch
      %191 = sbr.rel (%p188) target = $region40
    $region39: #{timepoint_forward.5} parent=5 // pred_region
      %s192 = ssub.s32 %s11, 1
      %p193 = scmp.lt.s32.totalorder %s16, 1
      %s194 = scalar_select %p193, %s16, 1
      %s195 = smul.addr %s194, 4
      %s196 = smul.addr %s195, 8
      %s197 = scalar_lea.vmem %s0, %s196
      %p198 = pneg %p37
      %p199 = pneg %p34
      %p200 = pneg %p58
      %p201 = pneg %p55
      %p202 = pneg %p79
      %p203 = pneg %p76
      %p204 = pneg %p100
      %p205 = pneg %p97
      %p206 = pneg %p121
      %p207 = pneg %p118
      %p208 = pneg %p147
      %p209 = pneg %p144
      %p210 = scmp.lt.s32.totalorder %s16, 1
      %s211 = scalar_select %p210, %s16, 1
      %s212 = smul.addr %s211, 4
      %s213 = smul.addr %s212, 4
      %s214 = scalar_lea.vmem %s5, %s213
      %p215 = scmp.lt.s32.totalorder %s16, 1
      %s216 = scalar_select %p215, %s16, 1
      %s217 = smul.addr %s216, 4
      %s218 = smul.addr %s217, 8
      %s219 = scalar_lea.vmem %s0, %s218
      %p220 = scmp.lt.s32.totalorder %s16, 1
      %s221 = scalar_select %p220, %s16, 1
      %s222 = smul.addr %s221, 4
      %s223 = smul.addr %s222, 4
      %s224 = scalar_lea.vmem %s5, %s223
      %v226 = vld [vmem:[%s219] sm:$0xff]
      %v227 = vld [vmem:[%s219 + $0x8] sm:$0xff]
      %v228 = vld [vmem:[%s219 + $0x10] sm:$0xff]
      %v229 = vld [vmem:[%s219 + $0x18] sm:$0xff]
      %vm234 = vcmask 1040384
      %v235 = vrot.slane %v226, 7
      %v236 = vrot.slane %v227, 7
      %v237 = vsel %vm234, %v235, %v236
      %v238 = vrot.slane %v228, 7
      %v239 = vsel %vm234, %v236, %v238
      %v240 = vrot.slane %v229, 7
      %v241 = vsel %vm234, %v238, %v240
      %242 = vrot.lane.b32.xlu0 %v235, 127
      %v243 = vpop.permute.xlu0 %242
      %244 = vrot.lane.b32.xlu0 %v237, 127
      %v245 = vpop.permute.xlu0 %244
      %246 = vrot.lane.b32.xlu0 %v239, 127
      %v247 = vpop.permute.xlu0 %246
      %248 = vrot.lane.b32.xlu0 %v241, 127
      %v249 = vpop.permute.xlu0 %248
      %v251 = vsel %vm234, 0.0, %v243
      %vm252 = vcmask 1046528
      %v253 = vrot.slane %v226, 1
      %v254 = vrot.slane %v227, 1
      %v255 = vsel %vm252, %v253, %v254
      %v256 = vrot.slane %v228, 1
      %v257 = vsel %vm252, %v254, %v256
      %v258 = vrot.slane %v229, 1
      %v259 = vsel %vm252, %v256, %v258
      %v261 = vsel %vm252, %v258, 0.0
      %v262 = vld [vmem:[%s1] sm:$0x1]
      %v263 = vld [vmem:[%s1 + $0x1] sm:$0x1]
      %v264 = vld [vmem:[%s1 + $0x2] sm:$0x1]
      %v265 = vld [vmem:[%s2] sm:$0x1]
      %267 = vset.pattern.permute.xlu0 0
      %268 = vperm.xlu0 %267, %v251
      %v269 = vpop.permute.xlu0 %268
      %271 = vset.pattern.permute.xlu0 0
      %272 = vperm.xlu0 %271, %v245
      %v273 = vpop.permute.xlu0 %272
      %275 = vset.pattern.permute.xlu0 0
      %276 = vperm.xlu0 %275, %v247
      %v277 = vpop.permute.xlu0 %276
      %279 = vset.pattern.permute.xlu0 0
      %280 = vperm.xlu0 %279, %v249
      %v281 = vpop.permute.xlu0 %280
      %v283 = vlaneseq
      %v284 = vshrl.u32 %v283, 7
      %v285 = vsub.s32 0, %v284
      %v286 = vrot.slane %v262, %v285
      %v287 = vmul.f32 %v269, %v286
      %v288 = vmul.f32 %v273, %v286
      %v289 = vmul.f32 %v277, %v286
      %v290 = vmul.f32 %v281, %v286
      %291 = vset.pattern.permute.xlu0 0
      %292 = vperm.xlu0 %291, %v226
      %v293 = vpop.permute.xlu0 %292
      %295 = vset.pattern.permute.xlu0 0
      %296 = vperm.xlu0 %295, %v227
      %v297 = vpop.permute.xlu0 %296
      %299 = vset.pattern.permute.xlu0 0
      %300 = vperm.xlu0 %299, %v228
      %v301 = vpop.permute.xlu0 %300
      %303 = vset.pattern.permute.xlu0 0
      %304 = vperm.xlu0 %303, %v229
      %v305 = vpop.permute.xlu0 %304
      %v307 = vlaneseq
      %v308 = vshrl.u32 %v307, 7
      %v309 = vsub.s32 0, %v308
      %v310 = vrot.slane %v263, %v309
      %v311 = vmul.f32 %v293, %v310
      %v312 = vmul.f32 %v297, %v310
      %v313 = vmul.f32 %v301, %v310
      %v314 = vmul.f32 %v305, %v310
      %v315 = vadd.f32 %v287, %v311
      %v316 = vadd.f32 %v288, %v312
      %v317 = vadd.f32 %v289, %v313
      %v318 = vadd.f32 %v290, %v314
      %319 = vset.pattern.permute.xlu0 1
      %320 = vperm.xlu0 %319, %v226
      %v321 = vpop.permute.xlu0 %320
      %323 = vset.pattern.permute.xlu0 1
      %324 = vperm.xlu0 %323, %v227
      %v325 = vpop.permute.xlu0 %324
      %327 = vset.pattern.permute.xlu0 1
      %328 = vperm.xlu0 %327, %v228
      %v329 = vpop.permute.xlu0 %328
      %331 = vset.pattern.permute.xlu0 1
      %332 = vperm.xlu0 %331, %v229
      %v333 = vpop.permute.xlu0 %332
      %v335 = vlaneseq
      %v336 = vshrl.u32 %v335, 7
      %v337 = vsub.s32 0, %v336
      %v338 = vrot.slane %v264, %v337
      %v339 = vmul.f32 %v321, %v338
      %v340 = vmul.f32 %v325, %v338
      %v341 = vmul.f32 %v329, %v338
      %v342 = vmul.f32 %v333, %v338
      %v343 = vadd.f32 %v315, %v339
      %v344 = vadd.f32 %v316, %v340
      %v345 = vadd.f32 %v317, %v341
      %v346 = vadd.f32 %v318, %v342
      %v348 = vlaneseq
      %v349 = vshrl.u32 %v348, 7
      %v350 = vsub.s32 0, %v349
      %v351 = vrot.slane %v265, %v350
      %v353 = vadd.f32 %v343, %v351
      %v354 = vadd.f32 %v344, %v351
      %v355 = vadd.f32 %v345, %v351
      %v356 = vadd.f32 %v346, %v351
      %v357 = vmax.f32 %v353, 0.0
      %v358 = vmax.f32 %v354, 0.0
      %v359 = vmax.f32 %v355, 0.0
      %v360 = vmax.f32 %v356, 0.0
      %v361 = vmul.f32 %v293, %v286
      %v362 = vmul.f32 %v297, %v286
      %v363 = vmul.f32 %v301, %v286
      %v364 = vmul.f32 %v305, %v286
      %v365 = vmul.f32 %v321, %v310
      %v366 = vmul.f32 %v325, %v310
      %v367 = vmul.f32 %v329, %v310
      %v368 = vmul.f32 %v333, %v310
      %v369 = vadd.f32 %v361, %v365
      %v370 = vadd.f32 %v362, %v366
      %v371 = vadd.f32 %v363, %v367
      %v372 = vadd.f32 %v364, %v368
      %373 = vset.pattern.permute.xlu0 0
      %374 = vperm.xlu0 %373, %v255
      %v375 = vpop.permute.xlu0 %374
      %377 = vset.pattern.permute.xlu0 0
      %378 = vperm.xlu0 %377, %v257
      %v379 = vpop.permute.xlu0 %378
      %381 = vset.pattern.permute.xlu0 0
      %382 = vperm.xlu0 %381, %v259
      %v383 = vpop.permute.xlu0 %382
      %386 = vset.pattern.permute.xlu0 0
      %387 = vperm.xlu0 %386, %v261
      %v388 = vpop.permute.xlu0 %387
      %v390 = vmul.f32 %v375, %v338
      %v391 = vmul.f32 %v379, %v338
      %v392 = vmul.f32 %v383, %v338
      %v393 = vmul.f32 %v388, %v338
      %v394 = vadd.f32 %v369, %v390
      %v395 = vadd.f32 %v370, %v391
      %v396 = vadd.f32 %v371, %v392
      %v397 = vadd.f32 %v372, %v393
      %v398 = vadd.f32 %v394, %v351
      %v399 = vadd.f32 %v395, %v351
      %v400 = vadd.f32 %v396, %v351
      %v401 = vadd.f32 %v397, %v351
      %v402 = vmax.f32 %v398, 0.0
      %v403 = vmax.f32 %v399, 0.0
      %v404 = vmax.f32 %v400, 0.0
      %v405 = vmax.f32 %v401, 0.0
      %v410 = vrot.slane %v402, 7
      %v411 = vrot.slane %v403, 7
      %v412 = vsel %vm234, %v410, %v411
      %v413 = vrot.slane %v404, 7
      %v414 = vsel %vm234, %v411, %v413
      %v415 = vrot.slane %v405, 7
      %v416 = vsel %vm234, %v413, %v415
      %v421 = vsel %vm234, 0.0, %v410
      %426 = vrot.lane.b32.xlu0 %v357, 64
      %v427 = vpop.permute.xlu0 %426
      %428 = vrot.lane.b32.xlu0 %v358, 64
      %v429 = vpop.permute.xlu0 %428
      %430 = vrot.lane.b32.xlu0 %v359, 64
      %v431 = vpop.permute.xlu0 %430
      %432 = vrot.lane.b32.xlu0 %v360, 64
      %v433 = vpop.permute.xlu0 %432
      %vm438 = vcmask 523264
      %v439 = vsel %vm438, %v421, %v427
      %v440 = vsel %vm438, %v412, %v429
      %v441 = vsel %vm438, %v414, %v431
      %v442 = vsel %vm438, %v416, %v433
      %v443 = vpack.c.bf16 %v440, %v439
      %v444 = vpack.c.bf16 %v403, %v402
      %v445 = vpack.c.bf16 %v442, %v441
      %v446 = vpack.c.bf16 %v405, %v404
      %v447 = vld [vmem:[%s3] sm:$0xf]
      %v448 = vld [vmem:[%s3 + $0x4] sm:$0xf]
      %v449 = vld [vmem:[%s3 + $0x8] sm:$0xf]
      %v450 = vld [vmem:[%s3 + $0xc] sm:$0xf]
      %v451 = vld [vmem:[%s3 + $0x10] sm:$0xf]
      %v452 = vld [vmem:[%s3 + $0x14] sm:$0xf]
      %v453 = vld [vmem:[%s3 + $0x18] sm:$0xf]
      %v454 = vld [vmem:[%s3 + $0x1c] sm:$0xf]
      %v455 = vld [vmem:[%s3 + $0x20] sm:$0xf]
      %v456 = vld [vmem:[%s3 + $0x24] sm:$0xf]
      %v457 = vld [vmem:[%s3 + $0x28] sm:$0xf]
      %v458 = vld [vmem:[%s3 + $0x2c] sm:$0xf]
      %v459 = vld [vmem:[%s3 + $0x30] sm:$0xf]
      %v460 = vld [vmem:[%s3 + $0x34] sm:$0xf]
      %v461 = vld [vmem:[%s3 + $0x38] sm:$0xf]
      %v462 = vld [vmem:[%s3 + $0x3c] sm:$0xf]
      %v463 = vld [vmem:[%s3 + $0x40] sm:$0xf]
      %v464 = vld [vmem:[%s3 + $0x44] sm:$0xf]
      %v465 = vld [vmem:[%s3 + $0x48] sm:$0xf]
      %v466 = vld [vmem:[%s3 + $0x4c] sm:$0xf]
      %v467 = vld [vmem:[%s3 + $0x50] sm:$0xf]
      %v468 = vld [vmem:[%s3 + $0x54] sm:$0xf]
      %v469 = vld [vmem:[%s3 + $0x58] sm:$0xf]
      %v470 = vld [vmem:[%s3 + $0x5c] sm:$0xf]
      %v471 = vld [vmem:[%s4] sm:$0x1]
      %v473 = vlaneseq
      %v474 = vshrl.u32 %v473, 7
      %v475 = vsub.s32 0, %v474
      %v476 = vrot.slane %v471, %v475
      %v502 = vunpack.c.l.b16 %v447
      %v503 = vunpack.c.l.b16 %v448
      %v504 = vunpack.c.l.b16 %v449
      %v505 = vunpack.c.l.b16 %v450
      %v506 = vunpack.c.l.b16 %v451
      %v507 = vunpack.c.l.b16 %v452
      %v508 = vunpack.c.l.b16 %v453
      %v509 = vunpack.c.l.b16 %v454
      %v510 = vunpack.c.l.b16 %v455
      %v511 = vunpack.c.l.b16 %v456
      %v512 = vunpack.c.l.b16 %v457
      %v513 = vunpack.c.l.b16 %v458
      %v514 = vunpack.c.l.b16 %v459
      %v515 = vunpack.c.l.b16 %v460
      %v516 = vunpack.c.l.b16 %v461
      %v517 = vunpack.c.l.b16 %v462
      %v518 = vunpack.c.l.b16 %v463
      %v519 = vunpack.c.l.b16 %v464
      %v520 = vunpack.c.l.b16 %v465
      %v521 = vunpack.c.l.b16 %v466
      %v522 = vunpack.c.l.b16 %v467
      %v523 = vunpack.c.l.b16 %v468
      %v524 = vunpack.c.l.b16 %v469
      %v525 = vunpack.c.l.b16 %v470
      %v526 = vpack.c.b16 %v503, %v502
      %v527 = vpack.c.b16 %v505, %v504
      %v528 = vpack.c.b16 %v507, %v506
      %v529 = vpack.c.b16 %v509, %v508
      %v530 = vpack.c.b16 %v511, %v510
      %v531 = vpack.c.b16 %v513, %v512
      %v532 = vpack.c.b16 %v515, %v514
      %v533 = vpack.c.b16 %v517, %v516
      %v534 = vpack.c.b16 %v519, %v518
      %v535 = vpack.c.b16 %v521, %v520
      %v536 = vpack.c.b16 %v523, %v522
      %v537 = vpack.c.b16 %v525, %v524
      %v551 = vsel %vm438, %v444, 0
      %v554 = vsel %vm438, %v446, 0
      %556 = vmatprep.subr.bf16.mxu0 0
      %557 = vmatpush1.bf16.msra.mxu0 %v533
      %558 = vmatprep.subr.bf16.mxu0 0
      %559 = vmatpush1.bf16.msra.mxu0 %v532
      %560 = vmatprep.subr.bf16.mxu0 0
      %561 = vmatpush1.bf16.msra.mxu0 %v531
      %562 = vmatprep.subr.bf16.mxu0 0
      %563 = vmatpush1.bf16.msra.mxu0 %v530
      %564 = vmatprep.subr.bf16.mxu0 0
      %565 = vmatpush1.bf16.msra.mxu0 %v529
      %566 = vmatprep.subr.bf16.mxu0 0
      %567 = vmatpush1.bf16.msra.mxu0 %v528
      %568 = vmatprep.subr.bf16.mxu0 0
      %569 = vmatpush1.bf16.msra.mxu0 %v527
      %570 = vmatprep.subr.bf16.mxu0 0
      %571 = vmatpush1.bf16.msra.mxu0 %v526
      %572 = vmatprep.subr.bf16.mxu0 0
      %573 = vmatpush2.bf16.msra.mxu0 0
      %574 = vmatprep.subr.bf16.mxu0 0
      %575 = vmatpush2.bf16.msra.mxu0 0
      %576 = vmatprep.subr.bf16.mxu0 0
      %577 = vmatpush2.bf16.msra.mxu0 0
      %578 = vmatprep.subr.bf16.mxu0 0
      %579 = vmatpush2.bf16.msra.mxu0 0
      %580 = vmatprep.subr.bf16.mxu0 0
      %581 = vmatpush2.bf16.msra.mxu0 %v537
      %582 = vmatprep.subr.bf16.mxu0 0
      %583 = vmatpush2.bf16.msra.mxu0 %v536
      %584 = vmatprep.subr.bf16.mxu0 0
      %585 = vmatpush2.bf16.msra.mxu0 %v535
      %586 = vmatprep.subr.bf16.mxu0 0
      %587 = vmatpush2.bf16.msra.mxu0 %v534
      %588 = vmatprep.mubr.bf16.mxu0 %v551
      %589 = vmatmul.mubr.bf16.gmra.mxu0 %v443
      %v590 = vpop.f32.mrf.mxu0
      %v591 = vadd.f32 %v476, %v590
      %v592 = vpop.f32.mrf.mxu0
      %v593 = vpop.f32.mrf.mxu0
      %v594 = vadd.f32 %v476, %v593
      %v595 = vpop.f32.mrf.mxu0
      %596 = vmatprep.mubr.bf16.mxu0 %v554
      %597 = vmatmul.mubr.bf16.gmra.mxu0 %v445
      %v598 = vpop.f32.mrf.mxu0
      %v599 = vadd.f32 %v476, %v598
      %v600 = vpop.f32.mrf.mxu0
      %v601 = vpop.f32.mrf.mxu0
      %v602 = vadd.f32 %v476, %v601
      %v603 = vpop.f32.mrf.mxu0
      %604 = vdwg.mxu0
      %v605 = vmax.f32 %v591, 0.0
      %v606 = vmax.f32 %v594, 0.0
      %v607 = vmax.f32 %v599, 0.0
      %v608 = vmax.f32 %v602, 0.0
      %v609 = vpack.c.bf16 %v606, %v605
      %v610 = vpack.c.bf16 %v608, %v607
      %v613 = vunpack.c.l.b16 %v609
      %v614 = vunpack.c.h.b16 %v609
      %v615 = vunpack.c.l.b16 %v610
      %v616 = vunpack.c.h.b16 %v610
      %v617 = vpack.c.b16 %v613, %v613
      %v618 = vpack.c.b16 %v614, %v614
      %v619 = vpack.c.b16 %v615, %v615
      %v620 = vpack.c.b16 %v616, %v616
      %vm625 = vcmask 519168
      %626 = vst.msk [vmem:[%s224] sm:$0xf] %vm625, %v617
      %627 = vst.msk [vmem:[%s224 + $0x4] sm:$0xf] %vm625, %v618
      %628 = vst.msk [vmem:[%s224 + $0x8] sm:$0xf] %vm625, %v619
      %629 = vst.msk [vmem:[%s224 + $0xc] sm:$0xf] %vm625, %v620
      %p630 = scmp.lt.s32.totalorder %s16, 1
      %s631 = scalar_select %p630, %s16, 1
      %s632 = smul.addr %s631, 4
      %s633 = smul.addr %s632, 4
      %s634 = scalar_lea.vmem %s5, %s633
      // Predicated region
      $region41: #{timepoint_forward.5} parent=39 // pred_check
        %p635 = pneg %p144
      $region42: #{timepoint_forward.5} parent=39 // pred_check_branch
        %637 = sbr.rel (%p635) target = $region44
      $region43: #{timepoint_forward.5} parent=39 // pred_region
        _
      $region44: #{timepoint_forward.5} parent=39 // pred_fallthru
        _
    $region40: #{timepoint_forward.5} parent=5 // pred_fallthru
      _
    %p638 = scmp.le.s32.totalorder 2, %s11
    // Predicated region
    $region45: #{timepoint_forward.5} parent=5 // pred_check
      %p639 = pneg %p638
    $region46: #{timepoint_forward.5} parent=5 // pred_check_branch
      %641 = sbr.rel (%p639) target = $region48
    $region47: #{timepoint_forward.5} parent=5 // pred_region
      %s642 = ssub.s32 %s11, 2
      // Predicated region
      $region49: #{timepoint_forward.5} parent=47 // pred_check
        %p643 = pneg %p150
      $region50: #{timepoint_forward.5} parent=47 // pred_check_branch
        %645 = sbr.rel (%p643) target = $region52
      $region51: #{timepoint_forward.5} parent=47 // pred_region
        %p646 = scmp.lt.s32.totalorder %s17, 1
        %s647 = scalar_select %p646, %s17, 1
        %s648 = smul.addr %s647, 4
        %s649 = smul.addr %s648, 4
        %s650 = scalar_lea.vmem %s5, %s649
      $region52: #{timepoint_forward.5} parent=47 // pred_fallthru
        _
    $region48: #{timepoint_forward.5} parent=5 // pred_fallthru
      _
  $region6: #{timepoint_forward.5} parent=0 // loop_footer
    %s15 = sadd.s32 1, %s11
  $region7: #{timepoint_forward.5} parent=0 // loop_footer_branch
    %10 = sbr.rel target = $region3
  $region8: #{timepoint_forward.5} parent=0 // loop_exit
    _

// kernel: timepoint_forward.9
$region0: #{timepoint_forward.9}
  #allocation0 [shape = 'u32[]', space=smem, size = 0x4, offset = 0x4, fixed_abs, tag = 'smem constant byte address 0x4 - core index']
  #allocation1 [shape = 'u32[144,128]{1,0:T(1,128)}', space=vmem, size = 0x12000, scoped, tag = 'internal scratch']
  %s0 = inlined_call_operand.vmem [shape: bf16[2,8,256], index: 0, kind: input, shape index: {}]
  %s1 = inlined_call_operand.vmem [shape: f32[2,8,8,256], index: 1, kind: output, shape index: {}]
  %s2 = sld [smem:[#allocation0]]
  $region37: #{timepoint_forward.9} parent=0
    _
  %s4 = ssub.s32 1, %s2
  %s5 = scalar_select 0, %s4, %s2
  loop: start=0, step=1, limit=4
  $region2: #{timepoint_forward.9} parent=0 // loop_pre_header
    _
  $region3: #{timepoint_forward.9} parent=0 // loop_header
    %s7 = sphi 0, %s11
    %p8 = scmp.ge.s32.totalorder %s7, 4
    %s17 = sphi 0, %s19
    %s20 = sphi 0, %s17
    %s21 = sphi 0, %s20
    %s37 = sphi 0, %s21
    %s43 = sphi 0, %s45
    %s46 = sphi 0, %s43
    %s47 = sphi 0, %s46
    %s63 = sphi 0, %s47
  $region4: #{timepoint_forward.9} parent=0 // loop_header_branch
    %10 = sbr.rel (%p8) target = $region8
  $region5: #{timepoint_forward.9} parent=0 // loop_body
    %s12 = ssub.s32 %s7, 1
    %s13 = ssub.s32 %s7, 2
    %s14 = sadd.s32 %s7, 1
    %s15 = ssub.s32 %s7, %s14
    %p16 = scmp.eq.s32.totalorder %s15, 0
    %s18 = sadd.s32 %s17, 1
    %s19 = scalar_select %p16, %s17, %s18
    %p22 = pneg %p16
    %p23 = scmp.eq.s32.totalorder %s7, 1
    %p24 = por %p22, %p23
    %p25 = scmp.ne.s32.totalorder %s17, %s20
    %p26 = scmp.eq.s32.totalorder %s7, 0
    %p27 = por %p25, %p26
    %p28 = scmp.ne.s32.totalorder %s17, %s20
    %p29 = scmp.eq.s32.totalorder %s12, 1
    %p30 = por %p28, %p29
    %p31 = scmp.ne.s32.totalorder %s20, %s21
    %p32 = scmp.eq.s32.totalorder %s12, 0
    %p33 = por %p31, %p32
    %p34 = scmp.ne.s32.totalorder %s20, %s21
    %p35 = scmp.eq.s32.totalorder %s13, 1
    %p36 = por %p34, %p35
    %p38 = scmp.ne.s32.totalorder %s21, %s37
    %p39 = scmp.eq.s32.totalorder %s13, 0
    %p40 = por %p38, %p39
    %s41 = ssub.s32 %s7, %s14
    %p42 = scmp.eq.s32.totalorder %s41, 0
    %s44 = sadd.s32 %s43, 1
    %s45 = scalar_select %p42, %s43, %s44
    %p48 = pneg %p42
    %p49 = scmp.eq.s32.totalorder %s7, 1
    %p50 = por %p48, %p49
    %p51 = scmp.ne.s32.totalorder %s43, %s46
    %p52 = scmp.eq.s32.totalorder %s7, 0
    %p53 = por %p51, %p52
    %p54 = scmp.ne.s32.totalorder %s43, %s46
    %p55 = scmp.eq.s32.totalorder %s12, 1
    %p56 = por %p54, %p55
    %p57 = scmp.ne.s32.totalorder %s46, %s47
    %p58 = scmp.eq.s32.totalorder %s12, 0
    %p59 = por %p57, %p58
    %p60 = scmp.ne.s32.totalorder %s46, %s47
    %p61 = scmp.eq.s32.totalorder %s13, 1
    %p62 = por %p60, %p61
    %p64 = scmp.ne.s32.totalorder %s47, %s63
    %p65 = scmp.eq.s32.totalorder %s13, 0
    %p66 = por %p64, %p65
    %p67 = scmp.le.s32.totalorder 1, %s7
    %p68 = scmp.lt.s32.totalorder %s7, 3
    %p69 = pnand %p67, %p68
    %p70 = pneg %p69
    // Predicated region
    $region9: #{timepoint_forward.9} parent=5 // pred_check
      _
    $region10: #{timepoint_forward.9} parent=5 // pred_check_branch
      %72 = sbr.rel (%p69) target = $region12
    $region11: #{timepoint_forward.9} parent=5 // pred_region
      %s73 = ssub.s32 %s7, 1
    $region12: #{timepoint_forward.9} parent=5 // pred_fallthru
      _
    %p74 = scmp.lt.s32.totalorder %s7, 2
    // Predicated region
    $region13: #{timepoint_forward.9} parent=5 // pred_check
      %p75 = pneg %p74
    $region14: #{timepoint_forward.9} parent=5 // pred_check_branch
      %77 = sbr.rel (%p75) target = $region16
    $region15: #{timepoint_forward.9} parent=5 // pred_region
      // Predicated region
      $region17: #{timepoint_forward.9} parent=15 // pred_check
        %p78 = pneg %p27
      $region18: #{timepoint_forward.9} parent=15 // pred_check_branch
        %80 = sbr.rel (%p78) target = $region20
      $region19: #{timepoint_forward.9} parent=15 // pred_region
        %p81 = scmp.lt.s32.totalorder %s7, 1
        %s82 = scalar_select %p81, %s7, 1
        %s83 = smul.addr %s82, 2
        %s84 = smul.addr %s83, 4
        %s85 = scalar_lea.vmem %s0, %s84
      $region20: #{timepoint_forward.9} parent=15 // pred_fallthru
        _
    $region16: #{timepoint_forward.9} parent=5 // pred_fallthru
      _
    %p86 = scmp.le.s32.totalorder 1, %s7
    %p87 = scmp.lt.s32.totalorder %s7, 3
    %p88 = pnand %p86, %p87
    %p89 = pneg %p88
    // Predicated region
    $region21: #{timepoint_forward.9} parent=5 // pred_check
      _
    $region22: #{timepoint_forward.9} parent=5 // pred_check_branch
      %91 = sbr.rel (%p88) target = $region24
    $region23: #{timepoint_forward.9} parent=5 // pred_region
      %s92 = ssub.s32 %s7, 1
      %p93 = scmp.lt.s32.totalorder %s12, 1
      %s94 = scalar_select %p93, %s12, 1
      %s95 = smul.addr %s94, 2
      %s96 = smul.addr %s95, 4
      %s97 = scalar_lea.vmem %s0, %s96
      %p98 = pneg %p33
      %p99 = pneg %p30
      %p100 = pneg %p59
      %p101 = pneg %p56
      %p102 = scmp.lt.s32.totalorder %s12, 1
      %s103 = scalar_select %p102, %s12, 1
      %s104 = smul.addr %s103, 16
      %s105 = smul.addr %s104, 8
      %s106 = scalar_lea.vmem %s1, %s105
      %p107 = scmp.lt.s32.totalorder %s12, 1
      %s108 = scalar_select %p107, %s12, 1
      %s109 = smul.addr %s108, 2
      %s110 = smul.addr %s109, 4
      %s111 = scalar_lea.vmem %s0, %s110
      %p112 = scmp.lt.s32.totalorder %s12, 1
      %s113 = scalar_select %p112, %s12, 1
      %s114 = smul.addr %s113, 16
      %s115 = smul.addr %s114, 8
      %s116 = scalar_lea.vmem %s1, %s115
      %v117 = vld [vmem:[%s111] sm:$0xff]
      %v118 = vunpack.c.l.bf16 %v117
      %v119 = vunpack.c.h.bf16 %v117
      %v122 = vrot.slane %v118, 7
      %v123 = vrot.slane %v119, 7
      %vm126 = vcmask 1040384
      %v127 = vsel %vm126, %v118, %v122
      %v128 = vsel %vm126, %v119, %v123
      %v129 = vrot.slane %v118, 1
      %v130 = vrot.slane %v119, 1
      %vm133 = vcmask 1046528
      %v134 = vsel %vm133, %v129, %v118
      %v135 = vsel %vm133, %v130, %v119
      %v136 = vmul.f32 %v127, 0.4375
      %v137 = vmul.f32 %v128, 0.4375
      %v138 = vmul.f32 %v118, 0.5625
      %v139 = vmul.f32 %v119, 0.5625
      %v140 = vadd.f32 %v136, %v138
      %v141 = vadd.f32 %v137, %v139
      %142 = vst [vmem:[%s116] sm:$0xff] %v140
      %143 = vst [vmem:[%s116 + $0x8] sm:$0xff] %v141
      %v144 = vmul.f32 %v127, 0.3125
      %v145 = vmul.f32 %v128, 0.3125
      %v146 = vmul.f32 %v118, 0.6875
      %v147 = vmul.f32 %v119, 0.6875
      %v148 = vadd.f32 %v144, %v146
      %v149 = vadd.f32 %v145, %v147
      %s150 = scalar_lea.vmem %s116, 16
      %151 = vst [vmem:[%s150] sm:$0xff] %v148
      %152 = vst [vmem:[%s150 + $0x8] sm:$0xff] %v149
      %v153 = vmul.f32 %v127, 0.1875
      %v154 = vmul.f32 %v128, 0.1875
      %v155 = vmul.f32 %v118, 0.8125
      %v156 = vmul.f32 %v119, 0.8125
      %v157 = vadd.f32 %v153, %v155
      %v158 = vadd.f32 %v154, %v156
      %s159 = scalar_lea.vmem %s116, 32
      %160 = vst [vmem:[%s159] sm:$0xff] %v157
      %161 = vst [vmem:[%s159 + $0x8] sm:$0xff] %v158
      %v162 = vmul.f32 %v127, 0.0625
      %v163 = vmul.f32 %v128, 0.0625
      %v164 = vmul.f32 %v118, 0.9375
      %v165 = vmul.f32 %v119, 0.9375
      %v166 = vadd.f32 %v162, %v164
      %v167 = vadd.f32 %v163, %v165
      %s168 = scalar_lea.vmem %s116, 48
      %169 = vst [vmem:[%s168] sm:$0xff] %v166
      %170 = vst [vmem:[%s168 + $0x8] sm:$0xff] %v167
      %v171 = vmul.f32 %v134, 0.0625
      %v172 = vmul.f32 %v135, 0.0625
      %v173 = vadd.f32 %v164, %v171
      %v174 = vadd.f32 %v165, %v172
      %s175 = scalar_lea.vmem %s116, 64
      %176 = vst [vmem:[%s175] sm:$0xff] %v173
      %177 = vst [vmem:[%s175 + $0x8] sm:$0xff] %v174
      %v178 = vmul.f32 %v134, 0.1875
      %v179 = vmul.f32 %v135, 0.1875
      %v180 = vadd.f32 %v155, %v178
      %v181 = vadd.f32 %v156, %v179
      %s182 = scalar_lea.vmem %s116, 80
      %183 = vst [vmem:[%s182] sm:$0xff] %v180
      %184 = vst [vmem:[%s182 + $0x8] sm:$0xff] %v181
      %v185 = vmul.f32 %v134, 0.3125
      %v186 = vmul.f32 %v135, 0.3125
      %v187 = vadd.f32 %v146, %v185
      %v188 = vadd.f32 %v147, %v186
      %s189 = scalar_lea.vmem %s116, 96
      %190 = vst [vmem:[%s189] sm:$0xff] %v187
      %191 = vst [vmem:[%s189 + $0x8] sm:$0xff] %v188
      %v192 = vmul.f32 %v134, 0.4375
      %v193 = vmul.f32 %v135, 0.4375
      %v194 = vadd.f32 %v138, %v192
      %v195 = vadd.f32 %v139, %v193
      %s196 = scalar_lea.vmem %s116, 112
      %197 = vst [vmem:[%s196] sm:$0xff] %v194
      %198 = vst [vmem:[%s196 + $0x8] sm:$0xff] %v195
      %p199 = scmp.lt.s32.totalorder %s12, 1
      %s200 = scalar_select %p199, %s12, 1
      %s201 = smul.addr %s200, 16
      %s202 = smul.addr %s201, 8
      %s203 = scalar_lea.vmem %s1, %s202
      // Predicated region
      $region25: #{timepoint_forward.9} parent=23 // pred_check
        %p204 = pneg %p56
      $region26: #{timepoint_forward.9} parent=23 // pred_check_branch
        %206 = sbr.rel (%p204) target = $region28
      $region27: #{timepoint_forward.9} parent=23 // pred_region
        _
      $region28: #{timepoint_forward.9} parent=23 // pred_fallthru
        _
    $region24: #{timepoint_forward.9} parent=5 // pred_fallthru
      _
    %p207 = scmp.le.s32.totalorder 2, %s7
    // Predicated region
    $region29: #{timepoint_forward.9} parent=5 // pred_check
      %p208 = pneg %p207
    $region30: #{timepoint_forward.9} parent=5 // pred_check_branch
      %210 = sbr.rel (%p208) target = $region32
    $region31: #{timepoint_forward.9} parent=5 // pred_region
      %s211 = ssub.s32 %s7, 2
      // Predicated region
      $region33: #{timepoint_forward.9} parent=31 // pred_check
        %p212 = pneg %p62
      $region34: #{timepoint_forward.9} parent=31 // pred_check_branch
        %214 = sbr.rel (%p212) target = $region36
      $region35: #{timepoint_forward.9} parent=31 // pred_region
        %p215 = scmp.lt.s32.totalorder %s13, 1
        %s216 = scalar_select %p215, %s13, 1
        %s217 = smul.addr %s216, 16
        %s218 = smul.addr %s217, 8
        %s219 = scalar_lea.vmem %s1, %s218
      $region36: #{timepoint_forward.9} parent=31 // pred_fallthru
        _
    $region32: #{timepoint_forward.9} parent=5 // pred_fallthru
      _
  $region6: #{timepoint_forward.9} parent=0 // loop_footer
    %s11 = sadd.s32 1, %s7
  $region7: #{timepoint_forward.9} parent=0 // loop_footer_branch
    %6 = sbr.rel target = $region3
  $region8: #{timepoint_forward.9} parent=0 // loop_exit
    _

</llo_original>
